<compile_context>
chip_gen: v5e
topology: v5e:2x2
jax: 0.10.0
libtpu: 0.0.40
codegen_flags: <defaults>
</compile_context>

<pallas_src>
import jax
import jax.numpy as jnp
from jax import lax
from jax.experimental import pallas as pl
from jax.experimental.pallas import tpu as pltpu

PAD = 9   # conv_spatial padding
KS = 7    # conv_spatial kernel size
DIL = 3   # conv_spatial dilation


def _gelu_exact(x):
    # nn.GELU() default ('none') = exact erf-based GELU
    return 0.5 * x * (1.0 + lax.erf(x * 0.7071067811865476))


def _live_taps(H, W):
    """Depthwise taps that can touch the interior (skip all-padding taps).

    Returns [(kh, kw, dh, dw)] grouped by kw (so the kernel rolls once per
    distinct dw), with dh = kh*DIL - PAD, dw = kw*DIL - PAD.
    """
    taps = []
    for kw in range(KS):
        dw = kw * DIL - PAD
        if dw <= -W or dw >= W:
            continue
        for kh in range(KS):
            dh = kh * DIL - PAD
            if dh <= -H or dh >= H:
                continue
            taps.append((kh, kw, dh, dw))
    return taps


def _pick_batch_block(B, H, W):
    """Largest divisor of B keeping the folded matmul M = bb*H*W around <=512."""
    target = max(1, 512 // max(1, H * W))
    bb = 1
    for d in range(1, B + 1):
        if B % d == 0 and d <= target:
            bb = d
    return bb


def attention2_kernel(x_ref, w1_ref, b1_ref, dwk_ref, wc1_ref, bc1_ref,
                      w2_ref, b2_ref, o_ref):
    BB, H, W, C = x_ref.shape
    M = BB * H * W
    taps = _live_taps(H, W)

    # ---- proj_1 (1x1 conv == channel matmul; bf16 MXU, f32 acc) + exact GELU
    x_bf = x_ref[...].reshape(M, C).astype(jnp.bfloat16)
    y = jnp.dot(x_bf, w1_ref[...], preferred_element_type=jnp.float32) + b1_ref[...]
    u = _gelu_exact(y)                         # (M, C) f32 — the "u" of HKA2
    u_hw = u.reshape(BB, H, W, C)

    # ---- HKA2.conv_spatial: depthwise 7x7, dilation 3, padding 9, in regs ---
    w_idx = lax.broadcasted_iota(jnp.int32, (1, 1, W, C), 2)
    zero_rows = {}
    for _, _, dh, _ in taps:
        n = abs(dh)
        if n and n not in zero_rows:
            zero_rows[n] = jnp.zeros((BB, n, W, C), jnp.float32)

    acc = None
    cur_dw = object()   # sentinel != any int
    y_w = None
    for t, (kh, kw, dh, dw) in enumerate(taps):
        if dw != cur_dw:
            cur_dw = dw
            if dw == 0:
                y_w = u_hw
            else:
                # shifted(w) = u(w + dw): sublane rotate on the XLU + border mask
                rolled = pltpu.roll(u_hw, (-dw) % W, 2)
                valid = jnp.logical_and(w_idx + dw >= 0, w_idx + dw < W)
                y_w = jnp.where(valid, rolled, 0.0)
        # H shift is free vreg re-indexing (concat with zero rows).
        if dh > 0:
            shifted = jnp.concatenate([y_w[:, dh:], zero_rows[dh]], axis=1)
        elif dh < 0:
            shifted = jnp.concatenate([zero_rows[-dh], y_w[:, :H + dh]], axis=1)
        else:
            shifted = y_w
        term = shifted * dwk_ref[t]            # tap pre-broadcast to (W, C)
        acc = term if acc is None else acc + term

    # ---- HKA2.conv1 (1x1 conv; depthwise bias folded into bc1 in wrapper) ---
    attn = jnp.dot(acc.reshape(M, C).astype(jnp.bfloat16), wc1_ref[...],
                   preferred_element_type=jnp.float32) + bc1_ref[...]

    # ---- gate: u * attn, then proj_2 (1x1 conv) + residual ------------------
    gated = (u * attn).astype(jnp.bfloat16)
    out = jnp.dot(gated, w2_ref[...], preferred_element_type=jnp.float32) + b2_ref[...]
    o_ref[...] = out.reshape(BB, H, W, C) + x_ref[...]


def attention2(x_nchw, params):
    """x_nchw: (B, C, H, W) float32. Returns (B, C, H, W) float32."""
    B, C, H, W = x_nchw.shape
    w1, b1, dwk, dwb, wc1, bc1, w2, b2 = params

    # NCHW -> NHWC (kept in the wrapper; disappears in an NHWC end-to-end model)
    x = jnp.transpose(x_nchw, (0, 2, 3, 1))

    # Live depthwise taps, pre-broadcast to (ntap, W, C): one aligned vreg each.
    taps = _live_taps(H, W)
    ntap = len(taps)
    dwk_rows = jnp.stack([dwk[kh, kw, :] for (kh, kw, _, _) in taps], axis=0)  # (ntap, C)
    dwk_b = jnp.tile(dwk_rows[:, None, :], (1, W, 1)).astype(jnp.float32)      # (ntap, W, C)

    # Fold the depthwise bias into conv1's bias (conv1 is linear): exact fold.
    bc1_eff = (dwb @ wc1 + bc1).astype(jnp.float32)                            # (1, C)

    # bf16 weights for the MXU (f32 accumulation in-kernel); biases stay f32.
    w1b = w1.astype(jnp.bfloat16)
    wc1b = wc1.astype(jnp.bfloat16)
    w2b = w2.astype(jnp.bfloat16)

    bb = _pick_batch_block(B, H, W)
    grid = (B // bb,)

    out = pl.pallas_call(
        attention2_kernel,
        out_shape=jax.ShapeDtypeStruct((B, H, W, C), jnp.float32),
        grid_spec=pltpu.PrefetchScalarGridSpec(
            num_scalar_prefetch=0,
            grid=grid,
            in_specs=[
                pl.BlockSpec((bb, H, W, C), lambda g: (g, 0, 0, 0)),   # x (NHWC)
                pl.BlockSpec((C, C), lambda g: (0, 0)),                # proj_1 W^T (bf16)
                pl.BlockSpec((1, C), lambda g: (0, 0)),                # proj_1 b
                pl.BlockSpec((ntap, W, C), lambda g: (0, 0, 0)),       # depthwise taps
                pl.BlockSpec((C, C), lambda g: (0, 0)),                # HKA2.conv1 W^T (bf16)
                pl.BlockSpec((1, C), lambda g: (0, 0)),                # conv1 b (+dw bias fold)
                pl.BlockSpec((C, C), lambda g: (0, 0)),                # proj_2 W^T (bf16)
                pl.BlockSpec((1, C), lambda g: (0, 0)),                # proj_2 b
            ],
            out_specs=pl.BlockSpec((bb, H, W, C), lambda g: (g, 0, 0, 0)),
        ),
        compiler_params=pltpu.CompilerParams(dimension_semantics=("parallel",)),
    )(x, w1b, b1, dwk_b, wc1b, bc1_eff, w2b, b2)

    return jnp.transpose(out, (0, 3, 1, 2))   # NHWC -> NCHW


# ----------------------------- pure-JAX reference ----------------------------
def attention2_ref(x, p):
    w1, b1, dwk, dwb, wc1, bc1, w2, b2 = p
    B, C, H, W = x.shape

    def conv1x1(z, wt, b):  # wt is (Cin, Cout)
        zf = jnp.transpose(z, (0, 2, 3, 1)).reshape(-1, C)
        o = zf @ wt + b
        return jnp.transpose(o.reshape(B, H, W, C), (0, 3, 1, 2))

    shortcut = x
    y = conv1x1(x, w1, b1[0])
    y = jax.nn.gelu(y, approximate=False)
    # depthwise dilated conv: dwk is (7,7,C) -> OIHW (C,1,7,7)
    k_oihw = jnp.transpose(dwk, (2, 0, 1))[:, None, :, :]
    attn = lax.conv_general_dilated(
        y, k_oihw, window_strides=(1, 1), padding=((PAD, PAD), (PAD, PAD)),
        rhs_dilation=(DIL, DIL), feature_group_count=C,
        dimension_numbers=('NCHW', 'OIHW', 'NCHW')) + dwb[0][None, :, None, None]
    attn = conv1x1(attn, wc1, bc1[0])
    gated = y * attn
    out = conv1x1(gated, w2, b2[0])
    return out + shortcut


# ----------------------------------- main ------------------------------------
if __name__ == "__main__":
    B, C, H, W = 2, 128, 8, 8   # d_model=C kept small (instead of 1024)
    key = jax.random.PRNGKey(0)
    ks = jax.random.split(key, 9)

    scale = 0.05
    # weights stored pre-transposed as (Cin, Cout); biases as (1, C);
    # depthwise kernel as (7, 7, C)
    params = (
        (jax.random.normal(ks[0], (C, C), jnp.float32) * scale),      # proj_1 W^T
        (jax.random.normal(ks[1], (1, C), jnp.float32) * scale),      # proj_1 b
        (jax.random.normal(ks[2], (KS, KS, C), jnp.float32) * scale), # depthwise k
        (jax.random.normal(ks[3], (1, C), jnp.float32) * scale),      # depthwise b
        (jax.random.normal(ks[4], (C, C), jnp.float32) * scale),      # HKA2.conv1 W^T
        (jax.random.normal(ks[5], (1, C), jnp.float32) * scale),      # HKA2.conv1 b
        (jax.random.normal(ks[6], (C, C), jnp.float32) * scale),      # proj_2 W^T
        (jax.random.normal(ks[7], (1, C), jnp.float32) * scale),      # proj_2 b
    )
    x = jax.random.normal(ks[8], (B, C, H, W), jnp.float32)

    out = attention2(x, params)
    jax.block_until_ready(out)

    ref = attention2_ref(x, params)
    jax.block_until_ready(ref)
    assert out.shape == (B, C, H, W)
    err = float(jnp.max(jnp.abs(out - ref)))
    # tolerance accounts for bf16 MXU operands (f32 accumulation) in the kernel
    assert err < 2e-3, err

    print("KERNEL_OK")
</pallas_src>

<mosaic_0001>
module attributes {stable_mosaic.version = 11 : i64} {
  func.func @attention2_kernel(%arg0: i32, %arg1: memref<2x8x8x128xf32, #tpu.memory_space<vmem>>, %arg2: memref<128x128xbf16, #tpu.memory_space<vmem>>, %arg3: memref<1x128xf32, #tpu.memory_space<vmem>>, %arg4: memref<25x8x128xf32, #tpu.memory_space<vmem>>, %arg5: memref<128x128xbf16, #tpu.memory_space<vmem>>, %arg6: memref<1x128xf32, #tpu.memory_space<vmem>>, %arg7: memref<128x128xbf16, #tpu.memory_space<vmem>>, %arg8: memref<1x128xf32, #tpu.memory_space<vmem>>, %arg9: memref<2x8x8x128xf32, #tpu.memory_space<vmem>>) attributes {dimension_semantics = [#tpu.dimension_semantics<parallel>], iteration_bounds = array<i64: 1>, scalar_prefetch = 0 : i64, scratch_operands = 0 : i64, tpu.core_type = #tpu.core_type<tc>, window_params = [{transform_indices = @transform_0, window_bounds = array<i64: 2, 8, 8, 128>}, {pipeline_mode = #tpu.pipeline_mode<synchronous>, transform_indices = @transform_1, window_bounds = array<i64: 128, 128>}, {pipeline_mode = #tpu.pipeline_mode<synchronous>, transform_indices = @transform_2, window_bounds = array<i64: 1, 128>}, {pipeline_mode = #tpu.pipeline_mode<synchronous>, transform_indices = @transform_3, window_bounds = array<i64: 25, 8, 128>}, {pipeline_mode = #tpu.pipeline_mode<synchronous>, transform_indices = @transform_4, window_bounds = array<i64: 128, 128>}, {pipeline_mode = #tpu.pipeline_mode<synchronous>, transform_indices = @transform_5, window_bounds = array<i64: 1, 128>}, {pipeline_mode = #tpu.pipeline_mode<synchronous>, transform_indices = @transform_6, window_bounds = array<i64: 128, 128>}, {pipeline_mode = #tpu.pipeline_mode<synchronous>, transform_indices = @transform_7, window_bounds = array<i64: 1, 128>}, {transform_indices = @transform_8, window_bounds = array<i64: 2, 8, 8, 128>}]} {
    %c0 = arith.constant 0 : index
    %c0_0 = arith.constant 0 : index
    %c0_1 = arith.constant 0 : index
    %c0_2 = arith.constant 0 : index
    %0 = vector.load %arg1[%c0, %c0_0, %c0_1, %c0_2] : memref<2x8x8x128xf32, #tpu.memory_space<vmem>>, vector<2x8x8x128xf32>
    %1 = vector.shape_cast %0 : vector<2x8x8x128xf32> to vector<128x128xf32>
    %2 = arith.truncf %1 : vector<128x128xf32> to vector<128x128xbf16>
    %c0_3 = arith.constant 0 : index
    %c0_4 = arith.constant 0 : index
    %3 = vector.load %arg2[%c0_3, %c0_4] : memref<128x128xbf16, #tpu.memory_space<vmem>>, vector<128x128xbf16>
    %cst = arith.constant dense<0.000000e+00> : vector<128x128xf32>
    %4 = tpu.matmul %2, %3, %cst {dimension_numbers = #tpu.dot_dimension_numbers<[1], [0], [0], [1], [0, 0, 1, 1], [], []>} : vector<128x128xbf16>, vector<128x128xbf16>, vector<128x128xf32> -> vector<128x128xf32>
    %c0_5 = arith.constant 0 : index
    %c0_6 = arith.constant 0 : index
    %5 = vector.load %arg3[%c0_5, %c0_6] : memref<1x128xf32, #tpu.memory_space<vmem>>, vector<1x128xf32>
    %6 = vector.broadcast %5 : vector<1x128xf32> to vector<128x128xf32>
    %7 = arith.addf %4, %6 : vector<128x128xf32>
    %cst_7 = arith.constant 5.000000e-01 : f32
    %8 = vector.broadcast %cst_7 : f32 to vector<128x128xf32>
    %9 = arith.mulf %8, %7 : vector<128x128xf32>
    %cst_8 = arith.constant 0.707106769 : f32
    %10 = vector.broadcast %cst_8 : f32 to vector<128x128xf32>
    %11 = arith.mulf %7, %10 : vector<128x128xf32>
    %12 = math.erf %11 : vector<128x128xf32>
    %cst_9 = arith.constant 1.000000e+00 : f32
    %13 = vector.broadcast %cst_9 : f32 to vector<128x128xf32>
    %14 = arith.addf %13, %12 : vector<128x128xf32>
    %15 = arith.mulf %9, %14 : vector<128x128xf32>
    %16 = vector.shape_cast %15 : vector<128x128xf32> to vector<2x8x8x128xf32>
    %17 = tpu.iota {dimensions = array<i32: 2>} : vector<1x1x8x128xi32>
    %cst_10 = arith.constant 0.000000e+00 : f32
    %18 = vector.broadcast %cst_10 : f32 to vector<2x6x8x128xf32>
    %cst_11 = arith.constant 0.000000e+00 : f32
    %19 = vector.broadcast %cst_11 : f32 to vector<2x3x8x128xf32>
    %c6_i32 = arith.constant 6 : i32
    %20 = tpu.dynamic_rotate %16 by %c6_i32 dim 2 : vector<2x8x8x128xf32>, i32 -> vector<2x8x8x128xf32>
    %c-6_i32 = arith.constant -6 : i32
    %21 = vector.broadcast %c-6_i32 : i32 to vector<1x1x8x128xi32>
    %22 = arith.addi %17, %21 : vector<1x1x8x128xi32>
    %c0_i32 = arith.constant 0 : i32
    %23 = vector.broadcast %c0_i32 : i32 to vector<1x1x8x128xi32>
    %24 = arith.cmpi sge, %22, %23 : vector<1x1x8x128xi32>
    %c-6_i32_12 = arith.constant -6 : i32
    %25 = vector.broadcast %c-6_i32_12 : i32 to vector<1x1x8x128xi32>
    %26 = arith.addi %17, %25 : vector<1x1x8x128xi32>
    %c8_i32 = arith.constant 8 : i32
    %27 = vector.broadcast %c8_i32 : i32 to vector<1x1x8x128xi32>
    %28 = arith.cmpi slt, %26, %27 : vector<1x1x8x128xi32>
    %29 = arith.andi %24, %28 : vector<1x1x8x128xi1>
    %cst_13 = arith.constant 0.000000e+00 : f32
    %30 = vector.shape_cast %29 : vector<1x1x8x128xi1> to vector<1x1x8x128xi1>
    %31 = vector.broadcast %30 : vector<1x1x8x128xi1> to vector<2x8x8x128xi1>
    %32 = vector.broadcast %cst_13 : f32 to vector<2x8x8x128xf32>
    %33 = arith.select %31, %20, %32 : vector<2x8x8x128xi1>, vector<2x8x8x128xf32>
    %34 = vector.extract_strided_slice %33 {offsets = [0, 0, 0, 0], sizes = [2, 2, 8, 128], strides = [1, 1, 1, 1]} : vector<2x8x8x128xf32> to vector<2x2x8x128xf32>
    %35 = tpu.concatenate %18, %34 in 1 : vector<2x6x8x128xf32>, vector<2x2x8x128xf32> -> vector<2x8x8x128xf32>
    %c0_14 = arith.constant 0 : index
    %c0_15 = arith.constant 0 : index
    %c0_16 = arith.constant 0 : index
    %36 = vector.load %arg4[%c0_14, %c0_15, %c0_16] : memref<25x8x128xf32, #tpu.memory_space<vmem>>, vector<1x8x128xf32>
    %37 = vector.shape_cast %36 : vector<1x8x128xf32> to vector<8x128xf32>
    %38 = vector.shape_cast %37 : vector<8x128xf32> to vector<1x1x8x128xf32>
    %39 = vector.broadcast %38 : vector<1x1x8x128xf32> to vector<2x8x8x128xf32>
    %40 = arith.mulf %35, %39 : vector<2x8x8x128xf32>
    %41 = vector.extract_strided_slice %33 {offsets = [0, 0, 0, 0], sizes = [2, 5, 8, 128], strides = [1, 1, 1, 1]} : vector<2x8x8x128xf32> to vector<2x5x8x128xf32>
    %42 = tpu.concatenate %19, %41 in 1 : vector<2x3x8x128xf32>, vector<2x5x8x128xf32> -> vector<2x8x8x128xf32>
    %c1 = arith.constant 1 : index
    %c0_17 = arith.constant 0 : index
    %c0_18 = arith.constant 0 : index
    %43 = vector.load %arg4[%c1, %c0_17, %c0_18] : memref<25x8x128xf32, #tpu.memory_space<vmem>>, vector<1x8x128xf32>
    %44 = vector.shape_cast %43 : vector<1x8x128xf32> to vector<8x128xf32>
    %45 = vector.shape_cast %44 : vector<8x128xf32> to vector<1x1x8x128xf32>
    %46 = vector.broadcast %45 : vector<1x1x8x128xf32> to vector<2x8x8x128xf32>
    %47 = arith.mulf %42, %46 : vector<2x8x8x128xf32>
    %48 = arith.addf %40, %47 : vector<2x8x8x128xf32>
    %c2 = arith.constant 2 : index
    %c0_19 = arith.constant 0 : index
    %c0_20 = arith.constant 0 : index
    %49 = vector.load %arg4[%c2, %c0_19, %c0_20] : memref<25x8x128xf32, #tpu.memory_space<vmem>>, vector<1x8x128xf32>
    %50 = vector.shape_cast %49 : vector<1x8x128xf32> to vector<8x128xf32>
    %51 = vector.shape_cast %50 : vector<8x128xf32> to vector<1x1x8x128xf32>
    %52 = vector.broadcast %51 : vector<1x1x8x128xf32> to vector<2x8x8x128xf32>
    %53 = arith.mulf %33, %52 : vector<2x8x8x128xf32>
    %54 = arith.addf %48, %53 : vector<2x8x8x128xf32>
    %55 = vector.extract_strided_slice %33 {offsets = [0, 3, 0, 0], sizes = [2, 5, 8, 128], strides = [1, 1, 1, 1]} : vector<2x8x8x128xf32> to vector<2x5x8x128xf32>
    %56 = tpu.concatenate %55, %19 in 1 : vector<2x5x8x128xf32>, vector<2x3x8x128xf32> -> vector<2x8x8x128xf32>
    %c3 = arith.constant 3 : index
    %c0_21 = arith.constant 0 : index
    %c0_22 = arith.constant 0 : index
    %57 = vector.load %arg4[%c3, %c0_21, %c0_22] : memref<25x8x128xf32, #tpu.memory_space<vmem>>, vector<1x8x128xf32>
    %58 = vector.shape_cast %57 : vector<1x8x128xf32> to vector<8x128xf32>
    %59 = vector.shape_cast %58 : vector<8x128xf32> to vector<1x1x8x128xf32>
    %60 = vector.broadcast %59 : vector<1x1x8x128xf32> to vector<2x8x8x128xf32>
    %61 = arith.mulf %56, %60 : vector<2x8x8x128xf32>
    %62 = arith.addf %54, %61 : vector<2x8x8x128xf32>
    %63 = vector.extract_strided_slice %33 {offsets = [0, 6, 0, 0], sizes = [2, 2, 8, 128], strides = [1, 1, 1, 1]} : vector<2x8x8x128xf32> to vector<2x2x8x128xf32>
    %64 = tpu.concatenate %63, %18 in 1 : vector<2x2x8x128xf32>, vector<2x6x8x128xf32> -> vector<2x8x8x128xf32>
    %c4 = arith.constant 4 : index
    %c0_23 = arith.constant 0 : index
    %c0_24 = arith.constant 0 : index
    %65 = vector.load %arg4[%c4, %c0_23, %c0_24] : memref<25x8x128xf32, #tpu.memory_space<vmem>>, vector<1x8x128xf32>
    %66 = vector.shape_cast %65 : vector<1x8x128xf32> to vector<8x128xf32>
    %67 = vector.shape_cast %66 : vector<8x128xf32> to vector<1x1x8x128xf32>
    %68 = vector.broadcast %67 : vector<1x1x8x128xf32> to vector<2x8x8x128xf32>
    %69 = arith.mulf %64, %68 : vector<2x8x8x128xf32>
    %70 = arith.addf %62, %69 : vector<2x8x8x128xf32>
    %c3_i32 = arith.constant 3 : i32
    %71 = tpu.dynamic_rotate %16 by %c3_i32 dim 2 : vector<2x8x8x128xf32>, i32 -> vector<2x8x8x128xf32>
    %c-3_i32 = arith.constant -3 : i32
    %72 = vector.broadcast %c-3_i32 : i32 to vector<1x1x8x128xi32>
    %73 = arith.addi %17, %72 : vector<1x1x8x128xi32>
    %c0_i32_25 = arith.constant 0 : i32
    %74 = vector.broadcast %c0_i32_25 : i32 to vector<1x1x8x128xi32>
    %75 = arith.cmpi sge, %73, %74 : vector<1x1x8x128xi32>
    %c-3_i32_26 = arith.constant -3 : i32
    %76 = vector.broadcast %c-3_i32_26 : i32 to vector<1x1x8x128xi32>
    %77 = arith.addi %17, %76 : vector<1x1x8x128xi32>
    %c8_i32_27 = arith.constant 8 : i32
    %78 = vector.broadcast %c8_i32_27 : i32 to vector<1x1x8x128xi32>
    %79 = arith.cmpi slt, %77, %78 : vector<1x1x8x128xi32>
    %80 = arith.andi %75, %79 : vector<1x1x8x128xi1>
    %cst_28 = arith.constant 0.000000e+00 : f32
    %81 = vector.shape_cast %80 : vector<1x1x8x128xi1> to vector<1x1x8x128xi1>
    %82 = vector.broadcast %81 : vector<1x1x8x128xi1> to vector<2x8x8x128xi1>
    %83 = vector.broadcast %cst_28 : f32 to vector<2x8x8x128xf32>
    %84 = arith.select %82, %71, %83 : vector<2x8x8x128xi1>, vector<2x8x8x128xf32>
    %85 = vector.extract_strided_slice %84 {offsets = [0, 0, 0, 0], sizes = [2, 2, 8, 128], strides = [1, 1, 1, 1]} : vector<2x8x8x128xf32> to vector<2x2x8x128xf32>
    %86 = tpu.concatenate %18, %85 in 1 : vector<2x6x8x128xf32>, vector<2x2x8x128xf32> -> vector<2x8x8x128xf32>
    %c5 = arith.constant 5 : index
    %c0_29 = arith.constant 0 : index
    %c0_30 = arith.constant 0 : index
    %87 = vector.load %arg4[%c5, %c0_29, %c0_30] : memref<25x8x128xf32, #tpu.memory_space<vmem>>, vector<1x8x128xf32>
    %88 = vector.shape_cast %87 : vector<1x8x128xf32> to vector<8x128xf32>
    %89 = vector.shape_cast %88 : vector<8x128xf32> to vector<1x1x8x128xf32>
    %90 = vector.broadcast %89 : vector<1x1x8x128xf32> to vector<2x8x8x128xf32>
    %91 = arith.mulf %86, %90 : vector<2x8x8x128xf32>
    %92 = arith.addf %70, %91 : vector<2x8x8x128xf32>
    %93 = vector.extract_strided_slice %84 {offsets = [0, 0, 0, 0], sizes = [2, 5, 8, 128], strides = [1, 1, 1, 1]} : vector<2x8x8x128xf32> to vector<2x5x8x128xf32>
    %94 = tpu.concatenate %19, %93 in 1 : vector<2x3x8x128xf32>, vector<2x5x8x128xf32> -> vector<2x8x8x128xf32>
    %c6 = arith.constant 6 : index
    %c0_31 = arith.constant 0 : index
    %c0_32 = arith.constant 0 : index
    %95 = vector.load %arg4[%c6, %c0_31, %c0_32] : memref<25x8x128xf32, #tpu.memory_space<vmem>>, vector<1x8x128xf32>
    %96 = vector.shape_cast %95 : vector<1x8x128xf32> to vector<8x128xf32>
    %97 = vector.shape_cast %96 : vector<8x128xf32> to vector<1x1x8x128xf32>
    %98 = vector.broadcast %97 : vector<1x1x8x128xf32> to vector<2x8x8x128xf32>
    %99 = arith.mulf %94, %98 : vector<2x8x8x128xf32>
    %100 = arith.addf %92, %99 : vector<2x8x8x128xf32>
    %c7 = arith.constant 7 : index
    %c0_33 = arith.constant 0 : index
    %c0_34 = arith.constant 0 : index
    %101 = vector.load %arg4[%c7, %c0_33, %c0_34] : memref<25x8x128xf32, #tpu.memory_space<vmem>>, vector<1x8x128xf32>
    %102 = vector.shape_cast %101 : vector<1x8x128xf32> to vector<8x128xf32>
    %103 = vector.shape_cast %102 : vector<8x128xf32> to vector<1x1x8x128xf32>
    %104 = vector.broadcast %103 : vector<1x1x8x128xf32> to vector<2x8x8x128xf32>
    %105 = arith.mulf %84, %104 : vector<2x8x8x128xf32>
    %106 = arith.addf %100, %105 : vector<2x8x8x128xf32>
    %107 = vector.extract_strided_slice %84 {offsets = [0, 3, 0, 0], sizes = [2, 5, 8, 128], strides = [1, 1, 1, 1]} : vector<2x8x8x128xf32> to vector<2x5x8x128xf32>
    %108 = tpu.concatenate %107, %19 in 1 : vector<2x5x8x128xf32>, vector<2x3x8x128xf32> -> vector<2x8x8x128xf32>
    %c8 = arith.constant 8 : index
    %c0_35 = arith.constant 0 : index
    %c0_36 = arith.constant 0 : index
    %109 = vector.load %arg4[%c8, %c0_35, %c0_36] : memref<25x8x128xf32, #tpu.memory_space<vmem>>, vector<1x8x128xf32>
    %110 = vector.shape_cast %109 : vector<1x8x128xf32> to vector<8x128xf32>
    %111 = vector.shape_cast %110 : vector<8x128xf32> to vector<1x1x8x128xf32>
    %112 = vector.broadcast %111 : vector<1x1x8x128xf32> to vector<2x8x8x128xf32>
    %113 = arith.mulf %108, %112 : vector<2x8x8x128xf32>
    %114 = arith.addf %106, %113 : vector<2x8x8x128xf32>
    %115 = vector.extract_strided_slice %84 {offsets = [0, 6, 0, 0], sizes = [2, 2, 8, 128], strides = [1, 1, 1, 1]} : vector<2x8x8x128xf32> to vector<2x2x8x128xf32>
    %116 = tpu.concatenate %115, %18 in 1 : vector<2x2x8x128xf32>, vector<2x6x8x128xf32> -> vector<2x8x8x128xf32>
    %c9 = arith.constant 9 : index
    %c0_37 = arith.constant 0 : index
    %c0_38 = arith.constant 0 : index
    %117 = vector.load %arg4[%c9, %c0_37, %c0_38] : memref<25x8x128xf32, #tpu.memory_space<vmem>>, vector<1x8x128xf32>
    %118 = vector.shape_cast %117 : vector<1x8x128xf32> to vector<8x128xf32>
    %119 = vector.shape_cast %118 : vector<8x128xf32> to vector<1x1x8x128xf32>
    %120 = vector.broadcast %119 : vector<1x1x8x128xf32> to vector<2x8x8x128xf32>
    %121 = arith.mulf %116, %120 : vector<2x8x8x128xf32>
    %122 = arith.addf %114, %121 : vector<2x8x8x128xf32>
    %123 = vector.extract_strided_slice %16 {offsets = [0, 0, 0, 0], sizes = [2, 2, 8, 128], strides = [1, 1, 1, 1]} : vector<2x8x8x128xf32> to vector<2x2x8x128xf32>
    %124 = tpu.concatenate %18, %123 in 1 : vector<2x6x8x128xf32>, vector<2x2x8x128xf32> -> vector<2x8x8x128xf32>
    %c10 = arith.constant 10 : index
    %c0_39 = arith.constant 0 : index
    %c0_40 = arith.constant 0 : index
    %125 = vector.load %arg4[%c10, %c0_39, %c0_40] : memref<25x8x128xf32, #tpu.memory_space<vmem>>, vector<1x8x128xf32>
    %126 = vector.shape_cast %125 : vector<1x8x128xf32> to vector<8x128xf32>
    %127 = vector.shape_cast %126 : vector<8x128xf32> to vector<1x1x8x128xf32>
    %128 = vector.broadcast %127 : vector<1x1x8x128xf32> to vector<2x8x8x128xf32>
    %129 = arith.mulf %124, %128 : vector<2x8x8x128xf32>
    %130 = arith.addf %122, %129 : vector<2x8x8x128xf32>
    %131 = vector.extract_strided_slice %16 {offsets = [0, 0, 0, 0], sizes = [2, 5, 8, 128], strides = [1, 1, 1, 1]} : vector<2x8x8x128xf32> to vector<2x5x8x128xf32>
    %132 = tpu.concatenate %19, %131 in 1 : vector<2x3x8x128xf32>, vector<2x5x8x128xf32> -> vector<2x8x8x128xf32>
    %c11 = arith.constant 11 : index
    %c0_41 = arith.constant 0 : index
    %c0_42 = arith.constant 0 : index
    %133 = vector.load %arg4[%c11, %c0_41, %c0_42] : memref<25x8x128xf32, #tpu.memory_space<vmem>>, vector<1x8x128xf32>
    %134 = vector.shape_cast %133 : vector<1x8x128xf32> to vector<8x128xf32>
    %135 = vector.shape_cast %134 : vector<8x128xf32> to vector<1x1x8x128xf32>
    %136 = vector.broadcast %135 : vector<1x1x8x128xf32> to vector<2x8x8x128xf32>
    %137 = arith.mulf %132, %136 : vector<2x8x8x128xf32>
    %138 = arith.addf %130, %137 : vector<2x8x8x128xf32>
    %c12 = arith.constant 12 : index
    %c0_43 = arith.constant 0 : index
    %c0_44 = arith.constant 0 : index
    %139 = vector.load %arg4[%c12, %c0_43, %c0_44] : memref<25x8x128xf32, #tpu.memory_space<vmem>>, vector<1x8x128xf32>
    %140 = vector.shape_cast %139 : vector<1x8x128xf32> to vector<8x128xf32>
    %141 = vector.shape_cast %140 : vector<8x128xf32> to vector<1x1x8x128xf32>
    %142 = vector.broadcast %141 : vector<1x1x8x128xf32> to vector<2x8x8x128xf32>
    %143 = arith.mulf %16, %142 : vector<2x8x8x128xf32>
    %144 = arith.addf %138, %143 : vector<2x8x8x128xf32>
    %145 = vector.extract_strided_slice %16 {offsets = [0, 3, 0, 0], sizes = [2, 5, 8, 128], strides = [1, 1, 1, 1]} : vector<2x8x8x128xf32> to vector<2x5x8x128xf32>
    %146 = tpu.concatenate %145, %19 in 1 : vector<2x5x8x128xf32>, vector<2x3x8x128xf32> -> vector<2x8x8x128xf32>
    %c13 = arith.constant 13 : index
    %c0_45 = arith.constant 0 : index
    %c0_46 = arith.constant 0 : index
    %147 = vector.load %arg4[%c13, %c0_45, %c0_46] : memref<25x8x128xf32, #tpu.memory_space<vmem>>, vector<1x8x128xf32>
    %148 = vector.shape_cast %147 : vector<1x8x128xf32> to vector<8x128xf32>
    %149 = vector.shape_cast %148 : vector<8x128xf32> to vector<1x1x8x128xf32>
    %150 = vector.broadcast %149 : vector<1x1x8x128xf32> to vector<2x8x8x128xf32>
    %151 = arith.mulf %146, %150 : vector<2x8x8x128xf32>
    %152 = arith.addf %144, %151 : vector<2x8x8x128xf32>
    %153 = vector.extract_strided_slice %16 {offsets = [0, 6, 0, 0], sizes = [2, 2, 8, 128], strides = [1, 1, 1, 1]} : vector<2x8x8x128xf32> to vector<2x2x8x128xf32>
    %154 = tpu.concatenate %153, %18 in 1 : vector<2x2x8x128xf32>, vector<2x6x8x128xf32> -> vector<2x8x8x128xf32>
    %c14 = arith.constant 14 : index
    %c0_47 = arith.constant 0 : index
    %c0_48 = arith.constant 0 : index
    %155 = vector.load %arg4[%c14, %c0_47, %c0_48] : memref<25x8x128xf32, #tpu.memory_space<vmem>>, vector<1x8x128xf32>
    %156 = vector.shape_cast %155 : vector<1x8x128xf32> to vector<8x128xf32>
    %157 = vector.shape_cast %156 : vector<8x128xf32> to vector<1x1x8x128xf32>
    %158 = vector.broadcast %157 : vector<1x1x8x128xf32> to vector<2x8x8x128xf32>
    %159 = arith.mulf %154, %158 : vector<2x8x8x128xf32>
    %160 = arith.addf %152, %159 : vector<2x8x8x128xf32>
    %c5_i32 = arith.constant 5 : i32
    %161 = tpu.dynamic_rotate %16 by %c5_i32 dim 2 : vector<2x8x8x128xf32>, i32 -> vector<2x8x8x128xf32>
    %c3_i32_49 = arith.constant 3 : i32
    %162 = vector.broadcast %c3_i32_49 : i32 to vector<1x1x8x128xi32>
    %163 = arith.addi %17, %162 : vector<1x1x8x128xi32>
    %c0_i32_50 = arith.constant 0 : i32
    %164 = vector.broadcast %c0_i32_50 : i32 to vector<1x1x8x128xi32>
    %165 = arith.cmpi sge, %163, %164 : vector<1x1x8x128xi32>
    %c3_i32_51 = arith.constant 3 : i32
    %166 = vector.broadcast %c3_i32_51 : i32 to vector<1x1x8x128xi32>
    %167 = arith.addi %17, %166 : vector<1x1x8x128xi32>
    %c8_i32_52 = arith.constant 8 : i32
    %168 = vector.broadcast %c8_i32_52 : i32 to vector<1x1x8x128xi32>
    %169 = arith.cmpi slt, %167, %168 : vector<1x1x8x128xi32>
    %170 = arith.andi %165, %169 : vector<1x1x8x128xi1>
    %cst_53 = arith.constant 0.000000e+00 : f32
    %171 = vector.shape_cast %170 : vector<1x1x8x128xi1> to vector<1x1x8x128xi1>
    %172 = vector.broadcast %171 : vector<1x1x8x128xi1> to vector<2x8x8x128xi1>
    %173 = vector.broadcast %cst_53 : f32 to vector<2x8x8x128xf32>
    %174 = arith.select %172, %161, %173 : vector<2x8x8x128xi1>, vector<2x8x8x128xf32>
    %175 = vector.extract_strided_slice %174 {offsets = [0, 0, 0, 0], sizes = [2, 2, 8, 128], strides = [1, 1, 1, 1]} : vector<2x8x8x128xf32> to vector<2x2x8x128xf32>
    %176 = tpu.concatenate %18, %175 in 1 : vector<2x6x8x128xf32>, vector<2x2x8x128xf32> -> vector<2x8x8x128xf32>
    %c15 = arith.constant 15 : index
    %c0_54 = arith.constant 0 : index
    %c0_55 = arith.constant 0 : index
    %177 = vector.load %arg4[%c15, %c0_54, %c0_55] : memref<25x8x128xf32, #tpu.memory_space<vmem>>, vector<1x8x128xf32>
    %178 = vector.shape_cast %177 : vector<1x8x128xf32> to vector<8x128xf32>
    %179 = vector.shape_cast %178 : vector<8x128xf32> to vector<1x1x8x128xf32>
    %180 = vector.broadcast %179 : vector<1x1x8x128xf32> to vector<2x8x8x128xf32>
    %181 = arith.mulf %176, %180 : vector<2x8x8x128xf32>
    %182 = arith.addf %160, %181 : vector<2x8x8x128xf32>
    %183 = vector.extract_strided_slice %174 {offsets = [0, 0, 0, 0], sizes = [2, 5, 8, 128], strides = [1, 1, 1, 1]} : vector<2x8x8x128xf32> to vector<2x5x8x128xf32>
    %184 = tpu.concatenate %19, %183 in 1 : vector<2x3x8x128xf32>, vector<2x5x8x128xf32> -> vector<2x8x8x128xf32>
    %c16 = arith.constant 16 : index
    %c0_56 = arith.constant 0 : index
    %c0_57 = arith.constant 0 : index
    %185 = vector.load %arg4[%c16, %c0_56, %c0_57] : memref<25x8x128xf32, #tpu.memory_space<vmem>>, vector<1x8x128xf32>
    %186 = vector.shape_cast %185 : vector<1x8x128xf32> to vector<8x128xf32>
    %187 = vector.shape_cast %186 : vector<8x128xf32> to vector<1x1x8x128xf32>
    %188 = vector.broadcast %187 : vector<1x1x8x128xf32> to vector<2x8x8x128xf32>
    %189 = arith.mulf %184, %188 : vector<2x8x8x128xf32>
    %190 = arith.addf %182, %189 : vector<2x8x8x128xf32>
    %c17 = arith.constant 17 : index
    %c0_58 = arith.constant 0 : index
    %c0_59 = arith.constant 0 : index
    %191 = vector.load %arg4[%c17, %c0_58, %c0_59] : memref<25x8x128xf32, #tpu.memory_space<vmem>>, vector<1x8x128xf32>
    %192 = vector.shape_cast %191 : vector<1x8x128xf32> to vector<8x128xf32>
    %193 = vector.shape_cast %192 : vector<8x128xf32> to vector<1x1x8x128xf32>
    %194 = vector.broadcast %193 : vector<1x1x8x128xf32> to vector<2x8x8x128xf32>
    %195 = arith.mulf %174, %194 : vector<2x8x8x128xf32>
    %196 = arith.addf %190, %195 : vector<2x8x8x128xf32>
    %197 = vector.extract_strided_slice %174 {offsets = [0, 3, 0, 0], sizes = [2, 5, 8, 128], strides = [1, 1, 1, 1]} : vector<2x8x8x128xf32> to vector<2x5x8x128xf32>
    %198 = tpu.concatenate %197, %19 in 1 : vector<2x5x8x128xf32>, vector<2x3x8x128xf32> -> vector<2x8x8x128xf32>
    %c18 = arith.constant 18 : index
    %c0_60 = arith.constant 0 : index
    %c0_61 = arith.constant 0 : index
    %199 = vector.load %arg4[%c18, %c0_60, %c0_61] : memref<25x8x128xf32, #tpu.memory_space<vmem>>, vector<1x8x128xf32>
    %200 = vector.shape_cast %199 : vector<1x8x128xf32> to vector<8x128xf32>
    %201 = vector.shape_cast %200 : vector<8x128xf32> to vector<1x1x8x128xf32>
    %202 = vector.broadcast %201 : vector<1x1x8x128xf32> to vector<2x8x8x128xf32>
    %203 = arith.mulf %198, %202 : vector<2x8x8x128xf32>
    %204 = arith.addf %196, %203 : vector<2x8x8x128xf32>
    %205 = vector.extract_strided_slice %174 {offsets = [0, 6, 0, 0], sizes = [2, 2, 8, 128], strides = [1, 1, 1, 1]} : vector<2x8x8x128xf32> to vector<2x2x8x128xf32>
    %206 = tpu.concatenate %205, %18 in 1 : vector<2x2x8x128xf32>, vector<2x6x8x128xf32> -> vector<2x8x8x128xf32>
    %c19 = arith.constant 19 : index
    %c0_62 = arith.constant 0 : index
    %c0_63 = arith.constant 0 : index
    %207 = vector.load %arg4[%c19, %c0_62, %c0_63] : memref<25x8x128xf32, #tpu.memory_space<vmem>>, vector<1x8x128xf32>
    %208 = vector.shape_cast %207 : vector<1x8x128xf32> to vector<8x128xf32>
    %209 = vector.shape_cast %208 : vector<8x128xf32> to vector<1x1x8x128xf32>
    %210 = vector.broadcast %209 : vector<1x1x8x128xf32> to vector<2x8x8x128xf32>
    %211 = arith.mulf %206, %210 : vector<2x8x8x128xf32>
    %212 = arith.addf %204, %211 : vector<2x8x8x128xf32>
    %c2_i32 = arith.constant 2 : i32
    %213 = tpu.dynamic_rotate %16 by %c2_i32 dim 2 : vector<2x8x8x128xf32>, i32 -> vector<2x8x8x128xf32>
    %c6_i32_64 = arith.constant 6 : i32
    %214 = vector.broadcast %c6_i32_64 : i32 to vector<1x1x8x128xi32>
    %215 = arith.addi %17, %214 : vector<1x1x8x128xi32>
    %c0_i32_65 = arith.constant 0 : i32
    %216 = vector.broadcast %c0_i32_65 : i32 to vector<1x1x8x128xi32>
    %217 = arith.cmpi sge, %215, %216 : vector<1x1x8x128xi32>
    %c6_i32_66 = arith.constant 6 : i32
    %218 = vector.broadcast %c6_i32_66 : i32 to vector<1x1x8x128xi32>
    %219 = arith.addi %17, %218 : vector<1x1x8x128xi32>
    %c8_i32_67 = arith.constant 8 : i32
    %220 = vector.broadcast %c8_i32_67 : i32 to vector<1x1x8x128xi32>
    %221 = arith.cmpi slt, %219, %220 : vector<1x1x8x128xi32>
    %222 = arith.andi %217, %221 : vector<1x1x8x128xi1>
    %cst_68 = arith.constant 0.000000e+00 : f32
    %223 = vector.shape_cast %222 : vector<1x1x8x128xi1> to vector<1x1x8x128xi1>
    %224 = vector.broadcast %223 : vector<1x1x8x128xi1> to vector<2x8x8x128xi1>
    %225 = vector.broadcast %cst_68 : f32 to vector<2x8x8x128xf32>
    %226 = arith.select %224, %213, %225 : vector<2x8x8x128xi1>, vector<2x8x8x128xf32>
    %227 = vector.extract_strided_slice %226 {offsets = [0, 0, 0, 0], sizes = [2, 2, 8, 128], strides = [1, 1, 1, 1]} : vector<2x8x8x128xf32> to vector<2x2x8x128xf32>
    %228 = tpu.concatenate %18, %227 in 1 : vector<2x6x8x128xf32>, vector<2x2x8x128xf32> -> vector<2x8x8x128xf32>
    %c20 = arith.constant 20 : index
    %c0_69 = arith.constant 0 : index
    %c0_70 = arith.constant 0 : index
    %229 = vector.load %arg4[%c20, %c0_69, %c0_70] : memref<25x8x128xf32, #tpu.memory_space<vmem>>, vector<1x8x128xf32>
    %230 = vector.shape_cast %229 : vector<1x8x128xf32> to vector<8x128xf32>
    %231 = vector.shape_cast %230 : vector<8x128xf32> to vector<1x1x8x128xf32>
    %232 = vector.broadcast %231 : vector<1x1x8x128xf32> to vector<2x8x8x128xf32>
    %233 = arith.mulf %228, %232 : vector<2x8x8x128xf32>
    %234 = arith.addf %212, %233 : vector<2x8x8x128xf32>
    %235 = vector.extract_strided_slice %226 {offsets = [0, 0, 0, 0], sizes = [2, 5, 8, 128], strides = [1, 1, 1, 1]} : vector<2x8x8x128xf32> to vector<2x5x8x128xf32>
    %236 = tpu.concatenate %19, %235 in 1 : vector<2x3x8x128xf32>, vector<2x5x8x128xf32> -> vector<2x8x8x128xf32>
    %c21 = arith.constant 21 : index
    %c0_71 = arith.constant 0 : index
    %c0_72 = arith.constant 0 : index
    %237 = vector.load %arg4[%c21, %c0_71, %c0_72] : memref<25x8x128xf32, #tpu.memory_space<vmem>>, vector<1x8x128xf32>
    %238 = vector.shape_cast %237 : vector<1x8x128xf32> to vector<8x128xf32>
    %239 = vector.shape_cast %238 : vector<8x128xf32> to vector<1x1x8x128xf32>
    %240 = vector.broadcast %239 : vector<1x1x8x128xf32> to vector<2x8x8x128xf32>
    %241 = arith.mulf %236, %240 : vector<2x8x8x128xf32>
    %242 = arith.addf %234, %241 : vector<2x8x8x128xf32>
    %c22 = arith.constant 22 : index
    %c0_73 = arith.constant 0 : index
    %c0_74 = arith.constant 0 : index
    %243 = vector.load %arg4[%c22, %c0_73, %c0_74] : memref<25x8x128xf32, #tpu.memory_space<vmem>>, vector<1x8x128xf32>
    %244 = vector.shape_cast %243 : vector<1x8x128xf32> to vector<8x128xf32>
    %245 = vector.shape_cast %244 : vector<8x128xf32> to vector<1x1x8x128xf32>
    %246 = vector.broadcast %245 : vector<1x1x8x128xf32> to vector<2x8x8x128xf32>
    %247 = arith.mulf %226, %246 : vector<2x8x8x128xf32>
    %248 = arith.addf %242, %247 : vector<2x8x8x128xf32>
    %249 = vector.extract_strided_slice %226 {offsets = [0, 3, 0, 0], sizes = [2, 5, 8, 128], strides = [1, 1, 1, 1]} : vector<2x8x8x128xf32> to vector<2x5x8x128xf32>
    %250 = tpu.concatenate %249, %19 in 1 : vector<2x5x8x128xf32>, vector<2x3x8x128xf32> -> vector<2x8x8x128xf32>
    %c23 = arith.constant 23 : index
    %c0_75 = arith.constant 0 : index
    %c0_76 = arith.constant 0 : index
    %251 = vector.load %arg4[%c23, %c0_75, %c0_76] : memref<25x8x128xf32, #tpu.memory_space<vmem>>, vector<1x8x128xf32>
    %252 = vector.shape_cast %251 : vector<1x8x128xf32> to vector<8x128xf32>
    %253 = vector.shape_cast %252 : vector<8x128xf32> to vector<1x1x8x128xf32>
    %254 = vector.broadcast %253 : vector<1x1x8x128xf32> to vector<2x8x8x128xf32>
    %255 = arith.mulf %250, %254 : vector<2x8x8x128xf32>
    %256 = arith.addf %248, %255 : vector<2x8x8x128xf32>
    %257 = vector.extract_strided_slice %226 {offsets = [0, 6, 0, 0], sizes = [2, 2, 8, 128], strides = [1, 1, 1, 1]} : vector<2x8x8x128xf32> to vector<2x2x8x128xf32>
    %258 = tpu.concatenate %257, %18 in 1 : vector<2x2x8x128xf32>, vector<2x6x8x128xf32> -> vector<2x8x8x128xf32>
    %c24 = arith.constant 24 : index
    %c0_77 = arith.constant 0 : index
    %c0_78 = arith.constant 0 : index
    %259 = vector.load %arg4[%c24, %c0_77, %c0_78] : memref<25x8x128xf32, #tpu.memory_space<vmem>>, vector<1x8x128xf32>
    %260 = vector.shape_cast %259 : vector<1x8x128xf32> to vector<8x128xf32>
    %261 = vector.shape_cast %260 : vector<8x128xf32> to vector<1x1x8x128xf32>
    %262 = vector.broadcast %261 : vector<1x1x8x128xf32> to vector<2x8x8x128xf32>
    %263 = arith.mulf %258, %262 : vector<2x8x8x128xf32>
    %264 = arith.addf %256, %263 : vector<2x8x8x128xf32>
    %265 = vector.shape_cast %264 : vector<2x8x8x128xf32> to vector<128x128xf32>
    %266 = arith.truncf %265 : vector<128x128xf32> to vector<128x128xbf16>
    %c0_79 = arith.constant 0 : index
    %c0_80 = arith.constant 0 : index
    %267 = vector.load %arg5[%c0_79, %c0_80] : memref<128x128xbf16, #tpu.memory_space<vmem>>, vector<128x128xbf16>
    %cst_81 = arith.constant dense<0.000000e+00> : vector<128x128xf32>
    %268 = tpu.matmul %266, %267, %cst_81 {dimension_numbers = #tpu.dot_dimension_numbers<[1], [0], [0], [1], [0, 0, 1, 1], [], []>} : vector<128x128xbf16>, vector<128x128xbf16>, vector<128x128xf32> -> vector<128x128xf32>
    %c0_82 = arith.constant 0 : index
    %c0_83 = arith.constant 0 : index
    %269 = vector.load %arg6[%c0_82, %c0_83] : memref<1x128xf32, #tpu.memory_space<vmem>>, vector<1x128xf32>
    %270 = vector.broadcast %269 : vector<1x128xf32> to vector<128x128xf32>
    %271 = arith.addf %268, %270 : vector<128x128xf32>
    %272 = arith.mulf %15, %271 : vector<128x128xf32>
    %273 = arith.truncf %272 : vector<128x128xf32> to vector<128x128xbf16>
    %c0_84 = arith.constant 0 : index
    %c0_85 = arith.constant 0 : index
    %274 = vector.load %arg7[%c0_84, %c0_85] : memref<128x128xbf16, #tpu.memory_space<vmem>>, vector<128x128xbf16>
    %cst_86 = arith.constant dense<0.000000e+00> : vector<128x128xf32>
    %275 = tpu.matmul %273, %274, %cst_86 {dimension_numbers = #tpu.dot_dimension_numbers<[1], [0], [0], [1], [0, 0, 1, 1], [], []>} : vector<128x128xbf16>, vector<128x128xbf16>, vector<128x128xf32> -> vector<128x128xf32>
    %c0_87 = arith.constant 0 : index
    %c0_88 = arith.constant 0 : index
    %276 = vector.load %arg8[%c0_87, %c0_88] : memref<1x128xf32, #tpu.memory_space<vmem>>, vector<1x128xf32>
    %277 = vector.broadcast %276 : vector<1x128xf32> to vector<128x128xf32>
    %278 = arith.addf %275, %277 : vector<128x128xf32>
    %279 = vector.shape_cast %278 : vector<128x128xf32> to vector<2x8x8x128xf32>
    %c0_89 = arith.constant 0 : index
    %c0_90 = arith.constant 0 : index
    %c0_91 = arith.constant 0 : index
    %c0_92 = arith.constant 0 : index
    %280 = vector.load %arg1[%c0_89, %c0_90, %c0_91, %c0_92] : memref<2x8x8x128xf32, #tpu.memory_space<vmem>>, vector<2x8x8x128xf32>
    %281 = arith.addf %279, %280 : vector<2x8x8x128xf32>
    %c0_93 = arith.constant 0 : index
    %c0_94 = arith.constant 0 : index
    %c0_95 = arith.constant 0 : index
    %c0_96 = arith.constant 0 : index
    %282 = vector.load %arg9[%c0_93, %c0_94, %c0_95, %c0_96] : memref<2x8x8x128xf32, #tpu.memory_space<vmem>>, vector<2x8x8x128xf32>
    tpu.vector_store %arg9[%c0_93, %c0_94, %c0_95, %c0_96], %281 {strides = array<i32>} : memref<2x8x8x128xf32, #tpu.memory_space<vmem>>, vector<2x8x8x128xf32>,
    return
  }
  func.func @transform_0(%arg0: i32) -> (i32, i32, i32, i32) {
    %c0_i32 = arith.constant 0 : i32
    %c0_i32_0 = arith.constant 0 : i32
    %c0_i32_1 = arith.constant 0 : i32
    %c0_i32_2 = arith.constant 0 : i32
    return %arg0, %c0_i32, %c0_i32_0, %c0_i32_1 : i32, i32, i32, i32
  }
  func.func @transform_1(%arg0: i32) -> (i32, i32) {
    %c0_i32 = arith.constant 0 : i32
    %c0_i32_0 = arith.constant 0 : i32
    %c0_i32_1 = arith.constant 0 : i32
    return %c0_i32, %c0_i32_0 : i32, i32
  }
  func.func @transform_2(%arg0: i32) -> (i32, i32) {
    %c0_i32 = arith.constant 0 : i32
    %c0_i32_0 = arith.constant 0 : i32
    %c0_i32_1 = arith.constant 0 : i32
    return %c0_i32, %c0_i32_0 : i32, i32
  }
  func.func @transform_3(%arg0: i32) -> (i32, i32, i32) {
    %c0_i32 = arith.constant 0 : i32
    %c0_i32_0 = arith.constant 0 : i32
    %c0_i32_1 = arith.constant 0 : i32
    %c0_i32_2 = arith.constant 0 : i32
    return %c0_i32, %c0_i32_0, %c0_i32_1 : i32, i32, i32
  }
  func.func @transform_4(%arg0: i32) -> (i32, i32) {
    %c0_i32 = arith.constant 0 : i32
    %c0_i32_0 = arith.constant 0 : i32
    %c0_i32_1 = arith.constant 0 : i32
    return %c0_i32, %c0_i32_0 : i32, i32
  }
  func.func @transform_5(%arg0: i32) -> (i32, i32) {
    %c0_i32 = arith.constant 0 : i32
    %c0_i32_0 = arith.constant 0 : i32
    %c0_i32_1 = arith.constant 0 : i32
    return %c0_i32, %c0_i32_0 : i32, i32
  }
  func.func @transform_6(%arg0: i32) -> (i32, i32) {
    %c0_i32 = arith.constant 0 : i32
    %c0_i32_0 = arith.constant 0 : i32
    %c0_i32_1 = arith.constant 0 : i32
    return %c0_i32, %c0_i32_0 : i32, i32
  }
  func.func @transform_7(%arg0: i32) -> (i32, i32) {
    %c0_i32 = arith.constant 0 : i32
    %c0_i32_0 = arith.constant 0 : i32
    %c0_i32_1 = arith.constant 0 : i32
    return %c0_i32, %c0_i32_0 : i32, i32
  }
  func.func @transform_8(%arg0: i32) -> (i32, i32, i32, i32) {
    %c0_i32 = arith.constant 0 : i32
    %c0_i32_0 = arith.constant 0 : i32
    %c0_i32_1 = arith.constant 0 : i32
    %c0_i32_2 = arith.constant 0 : i32
    return %arg0, %c0_i32, %c0_i32_0, %c0_i32_1 : i32, i32, i32, i32
  }
}

</mosaic_0001>

<llo_original>
// kernel: tpu_custom_call.1
$region0: #{tpu_custom_call.1}
  #allocation0 [shape = 'u32[]', space=smem, size = 0x4, offset = 0x4, fixed_abs, tag = 'smem constant byte address 0x4 - core index']
  #allocation1 [shape = 'u32[72,128]{1,0:T(1,128)}', space=vmem, size = 0x9000, scoped, tag = 'internal scratch']
  %s0 = inlined_call_operand.hbm [shape: f32[2,8,8,128], index: 0, kind: input, shape index: {}]
  %s1 = inlined_call_operand.hbm [shape: bf16[128,128], index: 1, kind: input, shape index: {}]
  %s2 = inlined_call_operand.vmem [shape: f32[1,128], index: 2, kind: input, shape index: {}]
  %s3 = inlined_call_operand.hbm [shape: f32[25,8,128], index: 3, kind: input, shape index: {}]
  %s4 = inlined_call_operand.hbm [shape: bf16[128,128], index: 4, kind: input, shape index: {}]
  %s5 = inlined_call_operand.vmem [shape: f32[1,128], index: 5, kind: input, shape index: {}]
  %s6 = inlined_call_operand.hbm [shape: bf16[128,128], index: 6, kind: input, shape index: {}]
  %s7 = inlined_call_operand.vmem [shape: f32[1,128], index: 7, kind: input, shape index: {}]
  %s8 = inlined_call_operand.hbm [shape: f32[2,8,8,128], index: 8, kind: output, shape index: {}]
  %s9 = sld [smem:[#allocation0]]
  $region62: #{tpu_custom_call.1} parent=0
    _
  %s11 = ssub.s32 1, %s9
  %s12 = scalar_select 0, %s11, %s9
  $region1: #{tpu_custom_call.1} parent=0
    #allocation2 [shape = 'u8[65536]{0}', space=vmem, size = 0x10000, scoped, tag = 'input window, operand 0, single buffered']
    #allocation3 [shape = 's32[1]{0}', space=sflag, size = 0x4, scoped, tag = 'scoped memory for tpu_custom_call.1']
    #allocation4 [shape = 's32[1]{0}', space=sflag, size = 0x4, scoped, tag = 'scoped memory for tpu_custom_call.1']
    #allocation5 [shape = 'u8[32768]{0}', space=vmem, size = 0x8000, scoped, tag = 'input window, operand 1, single buffered']
    #allocation6 [shape = 's32[1]{0}', space=sflag, size = 0x4, scoped, tag = 'scoped memory for tpu_custom_call.1']
    #allocation7 [shape = 'u8[102400]{0}', space=vmem, size = 0x19000, scoped, tag = 'input window, operand 3, single buffered']
    #allocation8 [shape = 'u8[32768]{0}', space=vmem, size = 0x8000, scoped, tag = 'input window, operand 4, single buffered']
    #allocation9 [shape = 's32[1]{0}', space=sflag, size = 0x4, scoped, tag = 'scoped memory for tpu_custom_call.1']
    #allocation10 [shape = 'u8[32768]{0}', space=vmem, size = 0x8000, scoped, tag = 'input window, operand 6, single buffered']
    #allocation11 [shape = 'u8[65536]{0}', space=vmem, size = 0x10000, scoped, tag = 'output window, operand 0, single buffered']
    %13 = vsyncpa [#allocation3], 0
    %14 = vsyncpa [#allocation6], 0
    %15 = vsyncpa [#allocation9], 0
    %16 = vsyncpa [#allocation4], 0
    // Predicated region
    $region2: #{tpu_custom_call.1} parent=1 // pred_check
      _
    $region3: #{tpu_custom_call.1} parent=1 // pred_check_branch
      %18 = sbr.rel (0) target = $region5
    $region4: #{tpu_custom_call.1} parent=1 // pred_region
      %20 = vsyncadd [#allocation3], 0
      %s21 = sshll.u32 %s0, 4
      %s22 = int_to_ptr.hbm [resolvable:$true] %s21
      %s23 = sshll.u32 [#allocation2], 4
      %s24 = int_to_ptr.vmem [resolvable:$true] %s23
      %29 = dma.hbm_to_vmem [thread:$0]  %s22, 2048, %s24, [#allocation3], 128, 128, 8
    $region5: #{tpu_custom_call.1} parent=1 // pred_fallthru
      _
    // Predicated region
    $region6: #{tpu_custom_call.1} parent=1 // pred_check
      _
    $region7: #{tpu_custom_call.1} parent=1 // pred_check_branch
      %31 = sbr.rel (0) target = $region9
    $region8: #{tpu_custom_call.1} parent=1 // pred_region
      %33 = vsyncadd [#allocation6], 0
      %s34 = sshll.u32 %s1, 4
      %s35 = int_to_ptr.hbm [resolvable:$true] %s34
      %s36 = sshll.u32 [#allocation5], 4
      %s37 = int_to_ptr.vmem [resolvable:$true] %s36
      %42 = dma.hbm_to_vmem [thread:$0]  %s35, 1024, %s37, [#allocation6], 64, 64, 4
    $region9: #{tpu_custom_call.1} parent=1 // pred_fallthru
      _
    // Predicated region
    $region10: #{tpu_custom_call.1} parent=1 // pred_check
      _
    $region11: #{tpu_custom_call.1} parent=1 // pred_check_branch
      %44 = sbr.rel (0) target = $region13
    $region12: #{tpu_custom_call.1} parent=1 // pred_region
      _
    $region13: #{tpu_custom_call.1} parent=1 // pred_fallthru
      _
    // Predicated region
    $region14: #{tpu_custom_call.1} parent=1 // pred_check
      _
    $region15: #{tpu_custom_call.1} parent=1 // pred_check_branch
      %46 = sbr.rel (0) target = $region17
    $region16: #{tpu_custom_call.1} parent=1 // pred_region
      %48 = vsyncadd [#allocation6], 0
      %s49 = sshll.u32 %s3, 4
      %s50 = int_to_ptr.hbm [resolvable:$true] %s49
      %s51 = sshll.u32 [#allocation7], 4
      %s52 = int_to_ptr.vmem [resolvable:$true] %s51
      %57 = dma.hbm_to_vmem [thread:$0]  %s50, 3200, %s52, [#allocation6], 128, 128, 8
    $region17: #{tpu_custom_call.1} parent=1 // pred_fallthru
      _
    // Predicated region
    $region18: #{tpu_custom_call.1} parent=1 // pred_check
      _
    $region19: #{tpu_custom_call.1} parent=1 // pred_check_branch
      %59 = sbr.rel (0) target = $region21
    $region20: #{tpu_custom_call.1} parent=1 // pred_region
      %61 = vsyncadd [#allocation9], 0
      %s62 = sshll.u32 %s4, 4
      %s63 = int_to_ptr.hbm [resolvable:$true] %s62
      %s64 = sshll.u32 [#allocation8], 4
      %s65 = int_to_ptr.vmem [resolvable:$true] %s64
      %70 = dma.hbm_to_vmem [thread:$0]  %s63, 1024, %s65, [#allocation9], 64, 64, 4
    $region21: #{tpu_custom_call.1} parent=1 // pred_fallthru
      _
    // Predicated region
    $region22: #{tpu_custom_call.1} parent=1 // pred_check
      _
    $region23: #{tpu_custom_call.1} parent=1 // pred_check_branch
      %72 = sbr.rel (0) target = $region25
    $region24: #{tpu_custom_call.1} parent=1 // pred_region
      _
    $region25: #{tpu_custom_call.1} parent=1 // pred_fallthru
      _
    // Predicated region
    $region26: #{tpu_custom_call.1} parent=1 // pred_check
      _
    $region27: #{tpu_custom_call.1} parent=1 // pred_check_branch
      %74 = sbr.rel (0) target = $region29
    $region28: #{tpu_custom_call.1} parent=1 // pred_region
      %76 = vsyncadd [#allocation9], 0
      %s77 = sshll.u32 %s6, 4
      %s78 = int_to_ptr.hbm [resolvable:$true] %s77
      %s79 = sshll.u32 [#allocation10], 4
      %s80 = int_to_ptr.vmem [resolvable:$true] %s79
      %85 = dma.hbm_to_vmem [thread:$0]  %s78, 1024, %s80, [#allocation9], 64, 64, 4
    $region29: #{tpu_custom_call.1} parent=1 // pred_fallthru
      _
    // Predicated region
    $region30: #{tpu_custom_call.1} parent=1 // pred_check
      _
    $region31: #{tpu_custom_call.1} parent=1 // pred_check_branch
      %87 = sbr.rel (0) target = $region33
    $region32: #{tpu_custom_call.1} parent=1 // pred_region
      _
    $region33: #{tpu_custom_call.1} parent=1 // pred_fallthru
      _
    // Predicated region
    $region34: #{tpu_custom_call.1} parent=1 // pred_check
      _
    $region35: #{tpu_custom_call.1} parent=1 // pred_check_branch
      %89 = sbr.rel (0) target = $region37
    $region36: #{tpu_custom_call.1} parent=1 // pred_region
      %91 = dma.done [#allocation3], 2048
    $region37: #{tpu_custom_call.1} parent=1 // pred_fallthru
      _
    // Predicated region
    $region38: #{tpu_custom_call.1} parent=1 // pred_check
      _
    $region39: #{tpu_custom_call.1} parent=1 // pred_check_branch
      %93 = sbr.rel (0) target = $region41
    $region40: #{tpu_custom_call.1} parent=1 // pred_region
      %95 = dma.done [#allocation6], 1024
    $region41: #{tpu_custom_call.1} parent=1 // pred_fallthru
      _
    // Predicated region
    $region42: #{tpu_custom_call.1} parent=1 // pred_check
      _
    $region43: #{tpu_custom_call.1} parent=1 // pred_check_branch
      %97 = sbr.rel (0) target = $region45
    $region44: #{tpu_custom_call.1} parent=1 // pred_region
      %99 = dma.done [#allocation6], 3200
    $region45: #{tpu_custom_call.1} parent=1 // pred_fallthru
      _
    // Predicated region
    $region46: #{tpu_custom_call.1} parent=1 // pred_check
      _
    $region47: #{tpu_custom_call.1} parent=1 // pred_check_branch
      %101 = sbr.rel (0) target = $region49
    $region48: #{tpu_custom_call.1} parent=1 // pred_region
      %103 = dma.done [#allocation9], 1024
    $region49: #{tpu_custom_call.1} parent=1 // pred_fallthru
      _
    // Predicated region
    $region50: #{tpu_custom_call.1} parent=1 // pred_check
      _
    $region51: #{tpu_custom_call.1} parent=1 // pred_check_branch
      %105 = sbr.rel (0) target = $region53
    $region52: #{tpu_custom_call.1} parent=1 // pred_region
      %107 = dma.done [#allocation9], 1024
    $region53: #{tpu_custom_call.1} parent=1 // pred_fallthru
      _
    %v108 = vld [vmem:[#allocation2] sm:$0xff]
    %v109 = vld [vmem:[#allocation2 + $0x8] sm:$0xff]
    %v110 = vld [vmem:[#allocation2 + $0x10] sm:$0xff]
    %v111 = vld [vmem:[#allocation2 + $0x18] sm:$0xff]
    %v112 = vld [vmem:[#allocation2 + $0x20] sm:$0xff]
    %v113 = vld [vmem:[#allocation2 + $0x28] sm:$0xff]
    %v114 = vld [vmem:[#allocation2 + $0x30] sm:$0xff]
    %v115 = vld [vmem:[#allocation2 + $0x38] sm:$0xff]
    %v116 = vld [vmem:[#allocation2 + $0x40] sm:$0xff]
    %v117 = vld [vmem:[#allocation2 + $0x48] sm:$0xff]
    %v118 = vld [vmem:[#allocation2 + $0x50] sm:$0xff]
    %v119 = vld [vmem:[#allocation2 + $0x58] sm:$0xff]
    %v120 = vld [vmem:[#allocation2 + $0x60] sm:$0xff]
    %v121 = vld [vmem:[#allocation2 + $0x68] sm:$0xff]
    %v122 = vld [vmem:[#allocation2 + $0x70] sm:$0xff]
    %v123 = vld [vmem:[#allocation2 + $0x78] sm:$0xff]
    %v124 = vpack.c.bf16 %v109, %v108
    %v125 = vpack.c.bf16 %v111, %v110
    %v126 = vpack.c.bf16 %v113, %v112
    %v127 = vpack.c.bf16 %v115, %v114
    %v128 = vpack.c.bf16 %v117, %v116
    %v129 = vpack.c.bf16 %v119, %v118
    %v130 = vpack.c.bf16 %v121, %v120
    %v131 = vpack.c.bf16 %v123, %v122
    %v132 = vld [vmem:[#allocation5] sm:$0xf]
    %v133 = vld [vmem:[#allocation5 + $0x4] sm:$0xf]
    %v134 = vld [vmem:[#allocation5 + $0x8] sm:$0xf]
    %v135 = vld [vmem:[#allocation5 + $0xc] sm:$0xf]
    %v136 = vld [vmem:[#allocation5 + $0x10] sm:$0xf]
    %v137 = vld [vmem:[#allocation5 + $0x14] sm:$0xf]
    %v138 = vld [vmem:[#allocation5 + $0x18] sm:$0xf]
    %v139 = vld [vmem:[#allocation5 + $0x1c] sm:$0xf]
    %v140 = vld [vmem:[#allocation5 + $0x20] sm:$0xf]
    %v141 = vld [vmem:[#allocation5 + $0x24] sm:$0xf]
    %v142 = vld [vmem:[#allocation5 + $0x28] sm:$0xf]
    %v143 = vld [vmem:[#allocation5 + $0x2c] sm:$0xf]
    %v144 = vld [vmem:[#allocation5 + $0x30] sm:$0xf]
    %v145 = vld [vmem:[#allocation5 + $0x34] sm:$0xf]
    %v146 = vld [vmem:[#allocation5 + $0x38] sm:$0xf]
    %v147 = vld [vmem:[#allocation5 + $0x3c] sm:$0xf]
    %v148 = vld [vmem:[%s2] sm:$0x1]
    %v150 = vperm.slane %v148, 0
    %v168 = vunpack.c.l.b16 %v132
    %v169 = vunpack.c.l.b16 %v133
    %v170 = vunpack.c.l.b16 %v134
    %v171 = vunpack.c.l.b16 %v135
    %v172 = vunpack.c.l.b16 %v136
    %v173 = vunpack.c.l.b16 %v137
    %v174 = vunpack.c.l.b16 %v138
    %v175 = vunpack.c.l.b16 %v139
    %v176 = vunpack.c.l.b16 %v140
    %v177 = vunpack.c.l.b16 %v141
    %v178 = vunpack.c.l.b16 %v142
    %v179 = vunpack.c.l.b16 %v143
    %v180 = vunpack.c.l.b16 %v144
    %v181 = vunpack.c.l.b16 %v145
    %v182 = vunpack.c.l.b16 %v146
    %v183 = vunpack.c.l.b16 %v147
    %v184 = vpack.c.b16 %v169, %v168
    %v185 = vpack.c.b16 %v171, %v170
    %v186 = vpack.c.b16 %v173, %v172
    %v187 = vpack.c.b16 %v175, %v174
    %v188 = vpack.c.b16 %v177, %v176
    %v189 = vpack.c.b16 %v179, %v178
    %v190 = vpack.c.b16 %v181, %v180
    %v191 = vpack.c.b16 %v183, %v182
    %200 = vmatpush.bf16.msra.mxu0 %v191
    %201 = vmatpush.bf16.msra.mxu0 %v190
    %202 = vmatpush.bf16.msra.mxu0 %v189
    %203 = vmatpush.bf16.msra.mxu0 %v188
    %204 = vmatpush.bf16.msra.mxu0 %v187
    %205 = vmatpush.bf16.msra.mxu0 %v186
    %206 = vmatpush.bf16.msra.mxu0 %v185
    %207 = vmatpush.bf16.msra.mxu0 %v184
    %208 = vmatmul.bf16.gmra.mxu0 %v124
    %v209 = vpop.f32.mrf.mxu0
    %v210 = vadd.f32 %v150, %v209
    %v211 = vpop.f32.mrf.mxu0
    %v212 = vadd.f32 %v150, %v211
    %213 = vmatmul.bf16.gmra.mxu0 %v125
    %v214 = vpop.f32.mrf.mxu0
    %v215 = vadd.f32 %v150, %v214
    %v216 = vpop.f32.mrf.mxu0
    %v217 = vadd.f32 %v150, %v216
    %218 = vmatmul.bf16.gmra.mxu0 %v126
    %v219 = vpop.f32.mrf.mxu0
    %v220 = vadd.f32 %v150, %v219
    %v221 = vpop.f32.mrf.mxu0
    %v222 = vadd.f32 %v150, %v221
    %223 = vmatmul.bf16.gmra.mxu0 %v127
    %v224 = vpop.f32.mrf.mxu0
    %v225 = vadd.f32 %v150, %v224
    %v226 = vpop.f32.mrf.mxu0
    %v227 = vadd.f32 %v150, %v226
    %228 = vmatmul.bf16.gmra.mxu0 %v128
    %v229 = vpop.f32.mrf.mxu0
    %v230 = vadd.f32 %v150, %v229
    %v231 = vpop.f32.mrf.mxu0
    %v232 = vadd.f32 %v150, %v231
    %233 = vmatmul.bf16.gmra.mxu0 %v129
    %v234 = vpop.f32.mrf.mxu0
    %v235 = vadd.f32 %v150, %v234
    %v236 = vpop.f32.mrf.mxu0
    %v237 = vadd.f32 %v150, %v236
    %238 = vmatmul.bf16.gmra.mxu0 %v130
    %v239 = vpop.f32.mrf.mxu0
    %v240 = vadd.f32 %v150, %v239
    %v241 = vpop.f32.mrf.mxu0
    %v242 = vadd.f32 %v150, %v241
    %243 = vmatmul.bf16.gmra.mxu0 %v131
    %v244 = vpop.f32.mrf.mxu0
    %v245 = vadd.f32 %v150, %v244
    %v246 = vpop.f32.mrf.mxu0
    %v247 = vadd.f32 %v150, %v246
    %248 = vdwg.mxu0
    %v249 = vmul.f32 %v210, 0.5
    %v250 = vmul.f32 %v212, 0.5
    %v251 = vmul.f32 %v215, 0.5
    %v252 = vmul.f32 %v217, 0.5
    %v253 = vmul.f32 %v220, 0.5
    %v254 = vmul.f32 %v222, 0.5
    %v255 = vmul.f32 %v225, 0.5
    %v256 = vmul.f32 %v227, 0.5
    %v257 = vmul.f32 %v230, 0.5
    %v258 = vmul.f32 %v232, 0.5
    %v259 = vmul.f32 %v235, 0.5
    %v260 = vmul.f32 %v237, 0.5
    %v261 = vmul.f32 %v240, 0.5
    %v262 = vmul.f32 %v242, 0.5
    %v263 = vmul.f32 %v245, 0.5
    %v264 = vmul.f32 %v247, 0.5
    %v265 = vmul.f32 %v210, 0.70710677
    %v266 = vmul.f32 %v212, 0.70710677
    %v267 = vmul.f32 %v215, 0.70710677
    %v268 = vmul.f32 %v217, 0.70710677
    %v269 = vmul.f32 %v220, 0.70710677
    %v270 = vmul.f32 %v222, 0.70710677
    %v271 = vmul.f32 %v225, 0.70710677
    %v272 = vmul.f32 %v227, 0.70710677
    %v273 = vmul.f32 %v230, 0.70710677
    %v274 = vmul.f32 %v232, 0.70710677
    %v275 = vmul.f32 %v235, 0.70710677
    %v276 = vmul.f32 %v237, 0.70710677
    %v277 = vmul.f32 %v240, 0.70710677
    %v278 = vmul.f32 %v242, 0.70710677
    %v279 = vmul.f32 %v245, 0.70710677
    %v280 = vmul.f32 %v247, 0.70710677
    %v281 = vmul.f32 %v265, %v265
    %v282 = vmin.f32 16.0, %v281
    %v283 = vmul.f32 %v282, 2.1237322e-06
    %v284 = vadd.f32 %v283, 0.00028619796
    %v285 = vmul.f32 %v282, %v284
    %v286 = vadd.f32 %v285, 0.0036580483
    %v287 = vmul.f32 %v282, %v286
    %v288 = vadd.f32 %v287, 0.05243302
    %v289 = vmul.f32 %v282, %v288
    %v290 = vadd.f32 %v289, 0.18741608
    %v291 = vmul.f32 %v282, %v290
    %v292 = vadd.f32 %v291, 1.1283791
    %v293 = vmul.f32 %v265, %v292
    %v294 = vmul.f32 %v282, 3.8918573e-05
    %v295 = vadd.f32 %v294, 0.001143296
    %v296 = vmul.f32 %v282, %v295
    %v297 = vadd.f32 %v296, 0.014752088
    %v298 = vmul.f32 %v282, %v297
    %v299 = vadd.f32 %v298, 0.112945676
    %v300 = vmul.f32 %v282, %v299
    %v301 = vadd.f32 %v300, 0.4994258
    %v302 = vmul.f32 %v282, %v301
    %v303 = vadd.f32 %v302, 1.0
    %v304 = vrcp.pop %v303
    %v305 = vmul.f32 %v303, %v304
    %v306 = vsub.f32 1.0, %v305
    %v307 = vmul.f32 %v304, %v306
    %v308 = vadd.f32 %v304, %v307
    %vm309 = vweird.f32 %v303
    %vm310 = vweird.f32 %v304
    %vm311 = vmor %vm309, %vm310
    %v312 = vsel %vm311, %v304, %v308
    %v313 = vand.u32 2147483647, %v303
    %vm314 = vcmp.eq.f32.partialorder %v313, 8.507059e+37
    %v315 = vand.u32 %v303, 2147483648
    %v316 = vor.u32 1.1754944e-38, %v315
    %v317 = vsel %vm314, %v316, %v312
    %v318 = vmul.f32 %v293, %v317
    %v319 = vmin.f32 %v318, 1.0
    %v320 = vmax.f32 %v319, -1.0
    %v321 = vmul.f32 %v266, %v266
    %v322 = vmin.f32 16.0, %v321
    %v323 = vmul.f32 %v322, 2.1237322e-06
    %v324 = vadd.f32 %v323, 0.00028619796
    %v325 = vmul.f32 %v322, %v324
    %v326 = vadd.f32 %v325, 0.0036580483
    %v327 = vmul.f32 %v322, %v326
    %v328 = vadd.f32 %v327, 0.05243302
    %v329 = vmul.f32 %v322, %v328
    %v330 = vadd.f32 %v329, 0.18741608
    %v331 = vmul.f32 %v322, %v330
    %v332 = vadd.f32 %v331, 1.1283791
    %v333 = vmul.f32 %v266, %v332
    %v334 = vmul.f32 %v322, 3.8918573e-05
    %v335 = vadd.f32 %v334, 0.001143296
    %v336 = vmul.f32 %v322, %v335
    %v337 = vadd.f32 %v336, 0.014752088
    %v338 = vmul.f32 %v322, %v337
    %v339 = vadd.f32 %v338, 0.112945676
    %v340 = vmul.f32 %v322, %v339
    %v341 = vadd.f32 %v340, 0.4994258
    %v342 = vmul.f32 %v322, %v341
    %v343 = vadd.f32 %v342, 1.0
    %v344 = vrcp.pop %v343
    %v345 = vmul.f32 %v343, %v344
    %v346 = vsub.f32 1.0, %v345
    %v347 = vmul.f32 %v344, %v346
    %v348 = vadd.f32 %v344, %v347
    %vm349 = vweird.f32 %v343
    %vm350 = vweird.f32 %v344
    %vm351 = vmor %vm349, %vm350
    %v352 = vsel %vm351, %v344, %v348
    %v353 = vand.u32 2147483647, %v343
    %vm354 = vcmp.eq.f32.partialorder %v353, 8.507059e+37
    %v355 = vand.u32 %v343, 2147483648
    %v356 = vor.u32 1.1754944e-38, %v355
    %v357 = vsel %vm354, %v356, %v352
    %v358 = vmul.f32 %v333, %v357
    %v359 = vmin.f32 %v358, 1.0
    %v360 = vmax.f32 %v359, -1.0
    %v361 = vmul.f32 %v267, %v267
    %v362 = vmin.f32 16.0, %v361
    %v363 = vmul.f32 %v362, 2.1237322e-06
    %v364 = vadd.f32 %v363, 0.00028619796
    %v365 = vmul.f32 %v362, %v364
    %v366 = vadd.f32 %v365, 0.0036580483
    %v367 = vmul.f32 %v362, %v366
    %v368 = vadd.f32 %v367, 0.05243302
    %v369 = vmul.f32 %v362, %v368
    %v370 = vadd.f32 %v369, 0.18741608
    %v371 = vmul.f32 %v362, %v370
    %v372 = vadd.f32 %v371, 1.1283791
    %v373 = vmul.f32 %v267, %v372
    %v374 = vmul.f32 %v362, 3.8918573e-05
    %v375 = vadd.f32 %v374, 0.001143296
    %v376 = vmul.f32 %v362, %v375
    %v377 = vadd.f32 %v376, 0.014752088
    %v378 = vmul.f32 %v362, %v377
    %v379 = vadd.f32 %v378, 0.112945676
    %v380 = vmul.f32 %v362, %v379
    %v381 = vadd.f32 %v380, 0.4994258
    %v382 = vmul.f32 %v362, %v381
    %v383 = vadd.f32 %v382, 1.0
    %v384 = vrcp.pop %v383
    %v385 = vmul.f32 %v383, %v384
    %v386 = vsub.f32 1.0, %v385
    %v387 = vmul.f32 %v384, %v386
    %v388 = vadd.f32 %v384, %v387
    %vm389 = vweird.f32 %v383
    %vm390 = vweird.f32 %v384
    %vm391 = vmor %vm389, %vm390
    %v392 = vsel %vm391, %v384, %v388
    %v393 = vand.u32 2147483647, %v383
    %vm394 = vcmp.eq.f32.partialorder %v393, 8.507059e+37
    %v395 = vand.u32 %v383, 2147483648
    %v396 = vor.u32 1.1754944e-38, %v395
    %v397 = vsel %vm394, %v396, %v392
    %v398 = vmul.f32 %v373, %v397
    %v399 = vmin.f32 %v398, 1.0
    %v400 = vmax.f32 %v399, -1.0
    %v401 = vmul.f32 %v268, %v268
    %v402 = vmin.f32 16.0, %v401
    %v403 = vmul.f32 %v402, 2.1237322e-06
    %v404 = vadd.f32 %v403, 0.00028619796
    %v405 = vmul.f32 %v402, %v404
    %v406 = vadd.f32 %v405, 0.0036580483
    %v407 = vmul.f32 %v402, %v406
    %v408 = vadd.f32 %v407, 0.05243302
    %v409 = vmul.f32 %v402, %v408
    %v410 = vadd.f32 %v409, 0.18741608
    %v411 = vmul.f32 %v402, %v410
    %v412 = vadd.f32 %v411, 1.1283791
    %v413 = vmul.f32 %v268, %v412
    %v414 = vmul.f32 %v402, 3.8918573e-05
    %v415 = vadd.f32 %v414, 0.001143296
    %v416 = vmul.f32 %v402, %v415
    %v417 = vadd.f32 %v416, 0.014752088
    %v418 = vmul.f32 %v402, %v417
    %v419 = vadd.f32 %v418, 0.112945676
    %v420 = vmul.f32 %v402, %v419
    %v421 = vadd.f32 %v420, 0.4994258
    %v422 = vmul.f32 %v402, %v421
    %v423 = vadd.f32 %v422, 1.0
    %v424 = vrcp.pop %v423
    %v425 = vmul.f32 %v423, %v424
    %v426 = vsub.f32 1.0, %v425
    %v427 = vmul.f32 %v424, %v426
    %v428 = vadd.f32 %v424, %v427
    %vm429 = vweird.f32 %v423
    %vm430 = vweird.f32 %v424
    %vm431 = vmor %vm429, %vm430
    %v432 = vsel %vm431, %v424, %v428
    %v433 = vand.u32 2147483647, %v423
    %vm434 = vcmp.eq.f32.partialorder %v433, 8.507059e+37
    %v435 = vand.u32 %v423, 2147483648
    %v436 = vor.u32 1.1754944e-38, %v435
    %v437 = vsel %vm434, %v436, %v432
    %v438 = vmul.f32 %v413, %v437
    %v439 = vmin.f32 %v438, 1.0
    %v440 = vmax.f32 %v439, -1.0
    %v441 = vmul.f32 %v269, %v269
    %v442 = vmin.f32 16.0, %v441
    %v443 = vmul.f32 %v442, 2.1237322e-06
    %v444 = vadd.f32 %v443, 0.00028619796
    %v445 = vmul.f32 %v442, %v444
    %v446 = vadd.f32 %v445, 0.0036580483
    %v447 = vmul.f32 %v442, %v446
    %v448 = vadd.f32 %v447, 0.05243302
    %v449 = vmul.f32 %v442, %v448
    %v450 = vadd.f32 %v449, 0.18741608
    %v451 = vmul.f32 %v442, %v450
    %v452 = vadd.f32 %v451, 1.1283791
    %v453 = vmul.f32 %v269, %v452
    %v454 = vmul.f32 %v442, 3.8918573e-05
    %v455 = vadd.f32 %v454, 0.001143296
    %v456 = vmul.f32 %v442, %v455
    %v457 = vadd.f32 %v456, 0.014752088
    %v458 = vmul.f32 %v442, %v457
    %v459 = vadd.f32 %v458, 0.112945676
    %v460 = vmul.f32 %v442, %v459
    %v461 = vadd.f32 %v460, 0.4994258
    %v462 = vmul.f32 %v442, %v461
    %v463 = vadd.f32 %v462, 1.0
    %v464 = vrcp.pop %v463
    %v465 = vmul.f32 %v463, %v464
    %v466 = vsub.f32 1.0, %v465
    %v467 = vmul.f32 %v464, %v466
    %v468 = vadd.f32 %v464, %v467
    %vm469 = vweird.f32 %v463
    %vm470 = vweird.f32 %v464
    %vm471 = vmor %vm469, %vm470
    %v472 = vsel %vm471, %v464, %v468
    %v473 = vand.u32 2147483647, %v463
    %vm474 = vcmp.eq.f32.partialorder %v473, 8.507059e+37
    %v475 = vand.u32 %v463, 2147483648
    %v476 = vor.u32 1.1754944e-38, %v475
    %v477 = vsel %vm474, %v476, %v472
    %v478 = vmul.f32 %v453, %v477
    %v479 = vmin.f32 %v478, 1.0
    %v480 = vmax.f32 %v479, -1.0
    %v481 = vmul.f32 %v270, %v270
    %v482 = vmin.f32 16.0, %v481
    %v483 = vmul.f32 %v482, 2.1237322e-06
    %v484 = vadd.f32 %v483, 0.00028619796
    %v485 = vmul.f32 %v482, %v484
    %v486 = vadd.f32 %v485, 0.0036580483
    %v487 = vmul.f32 %v482, %v486
    %v488 = vadd.f32 %v487, 0.05243302
    %v489 = vmul.f32 %v482, %v488
    %v490 = vadd.f32 %v489, 0.18741608
    %v491 = vmul.f32 %v482, %v490
    %v492 = vadd.f32 %v491, 1.1283791
    %v493 = vmul.f32 %v270, %v492
    %v494 = vmul.f32 %v482, 3.8918573e-05
    %v495 = vadd.f32 %v494, 0.001143296
    %v496 = vmul.f32 %v482, %v495
    %v497 = vadd.f32 %v496, 0.014752088
    %v498 = vmul.f32 %v482, %v497
    %v499 = vadd.f32 %v498, 0.112945676
    %v500 = vmul.f32 %v482, %v499
    %v501 = vadd.f32 %v500, 0.4994258
    %v502 = vmul.f32 %v482, %v501
    %v503 = vadd.f32 %v502, 1.0
    %v504 = vrcp.pop %v503
    %v505 = vmul.f32 %v503, %v504
    %v506 = vsub.f32 1.0, %v505
    %v507 = vmul.f32 %v504, %v506
    %v508 = vadd.f32 %v504, %v507
    %vm509 = vweird.f32 %v503
    %vm510 = vweird.f32 %v504
    %vm511 = vmor %vm509, %vm510
    %v512 = vsel %vm511, %v504, %v508
    %v513 = vand.u32 2147483647, %v503
    %vm514 = vcmp.eq.f32.partialorder %v513, 8.507059e+37
    %v515 = vand.u32 %v503, 2147483648
    %v516 = vor.u32 1.1754944e-38, %v515
    %v517 = vsel %vm514, %v516, %v512
    %v518 = vmul.f32 %v493, %v517
    %v519 = vmin.f32 %v518, 1.0
    %v520 = vmax.f32 %v519, -1.0
    %v521 = vmul.f32 %v271, %v271
    %v522 = vmin.f32 16.0, %v521
    %v523 = vmul.f32 %v522, 2.1237322e-06
    %v524 = vadd.f32 %v523, 0.00028619796
    %v525 = vmul.f32 %v522, %v524
    %v526 = vadd.f32 %v525, 0.0036580483
    %v527 = vmul.f32 %v522, %v526
    %v528 = vadd.f32 %v527, 0.05243302
    %v529 = vmul.f32 %v522, %v528
    %v530 = vadd.f32 %v529, 0.18741608
    %v531 = vmul.f32 %v522, %v530
    %v532 = vadd.f32 %v531, 1.1283791
    %v533 = vmul.f32 %v271, %v532
    %v534 = vmul.f32 %v522, 3.8918573e-05
    %v535 = vadd.f32 %v534, 0.001143296
    %v536 = vmul.f32 %v522, %v535
    %v537 = vadd.f32 %v536, 0.014752088
    %v538 = vmul.f32 %v522, %v537
    %v539 = vadd.f32 %v538, 0.112945676
    %v540 = vmul.f32 %v522, %v539
    %v541 = vadd.f32 %v540, 0.4994258
    %v542 = vmul.f32 %v522, %v541
    %v543 = vadd.f32 %v542, 1.0
    %v544 = vrcp.pop %v543
    %v545 = vmul.f32 %v543, %v544
    %v546 = vsub.f32 1.0, %v545
    %v547 = vmul.f32 %v544, %v546
    %v548 = vadd.f32 %v544, %v547
    %vm549 = vweird.f32 %v543
    %vm550 = vweird.f32 %v544
    %vm551 = vmor %vm549, %vm550
    %v552 = vsel %vm551, %v544, %v548
    %v553 = vand.u32 2147483647, %v543
    %vm554 = vcmp.eq.f32.partialorder %v553, 8.507059e+37
    %v555 = vand.u32 %v543, 2147483648
    %v556 = vor.u32 1.1754944e-38, %v555
    %v557 = vsel %vm554, %v556, %v552
    %v558 = vmul.f32 %v533, %v557
    %v559 = vmin.f32 %v558, 1.0
    %v560 = vmax.f32 %v559, -1.0
    %v561 = vmul.f32 %v272, %v272
    %v562 = vmin.f32 16.0, %v561
    %v563 = vmul.f32 %v562, 2.1237322e-06
    %v564 = vadd.f32 %v563, 0.00028619796
    %v565 = vmul.f32 %v562, %v564
    %v566 = vadd.f32 %v565, 0.0036580483
    %v567 = vmul.f32 %v562, %v566
    %v568 = vadd.f32 %v567, 0.05243302
    %v569 = vmul.f32 %v562, %v568
    %v570 = vadd.f32 %v569, 0.18741608
    %v571 = vmul.f32 %v562, %v570
    %v572 = vadd.f32 %v571, 1.1283791
    %v573 = vmul.f32 %v272, %v572
    %v574 = vmul.f32 %v562, 3.8918573e-05
    %v575 = vadd.f32 %v574, 0.001143296
    %v576 = vmul.f32 %v562, %v575
    %v577 = vadd.f32 %v576, 0.014752088
    %v578 = vmul.f32 %v562, %v577
    %v579 = vadd.f32 %v578, 0.112945676
    %v580 = vmul.f32 %v562, %v579
    %v581 = vadd.f32 %v580, 0.4994258
    %v582 = vmul.f32 %v562, %v581
    %v583 = vadd.f32 %v582, 1.0
    %v584 = vrcp.pop %v583
    %v585 = vmul.f32 %v583, %v584
    %v586 = vsub.f32 1.0, %v585
    %v587 = vmul.f32 %v584, %v586
    %v588 = vadd.f32 %v584, %v587
    %vm589 = vweird.f32 %v583
    %vm590 = vweird.f32 %v584
    %vm591 = vmor %vm589, %vm590
    %v592 = vsel %vm591, %v584, %v588
    %v593 = vand.u32 2147483647, %v583
    %vm594 = vcmp.eq.f32.partialorder %v593, 8.507059e+37
    %v595 = vand.u32 %v583, 2147483648
    %v596 = vor.u32 1.1754944e-38, %v595
    %v597 = vsel %vm594, %v596, %v592
    %v598 = vmul.f32 %v573, %v597
    %v599 = vmin.f32 %v598, 1.0
    %v600 = vmax.f32 %v599, -1.0
    %v601 = vmul.f32 %v273, %v273
    %v602 = vmin.f32 16.0, %v601
    %v603 = vmul.f32 %v602, 2.1237322e-06
    %v604 = vadd.f32 %v603, 0.00028619796
    %v605 = vmul.f32 %v602, %v604
    %v606 = vadd.f32 %v605, 0.0036580483
    %v607 = vmul.f32 %v602, %v606
    %v608 = vadd.f32 %v607, 0.05243302
    %v609 = vmul.f32 %v602, %v608
    %v610 = vadd.f32 %v609, 0.18741608
    %v611 = vmul.f32 %v602, %v610
    %v612 = vadd.f32 %v611, 1.1283791
    %v613 = vmul.f32 %v273, %v612
    %v614 = vmul.f32 %v602, 3.8918573e-05
    %v615 = vadd.f32 %v614, 0.001143296
    %v616 = vmul.f32 %v602, %v615
    %v617 = vadd.f32 %v616, 0.014752088
    %v618 = vmul.f32 %v602, %v617
    %v619 = vadd.f32 %v618, 0.112945676
    %v620 = vmul.f32 %v602, %v619
    %v621 = vadd.f32 %v620, 0.4994258
    %v622 = vmul.f32 %v602, %v621
    %v623 = vadd.f32 %v622, 1.0
    %v624 = vrcp.pop %v623
    %v625 = vmul.f32 %v623, %v624
    %v626 = vsub.f32 1.0, %v625
    %v627 = vmul.f32 %v624, %v626
    %v628 = vadd.f32 %v624, %v627
    %vm629 = vweird.f32 %v623
    %vm630 = vweird.f32 %v624
    %vm631 = vmor %vm629, %vm630
    %v632 = vsel %vm631, %v624, %v628
    %v633 = vand.u32 2147483647, %v623
    %vm634 = vcmp.eq.f32.partialorder %v633, 8.507059e+37
    %v635 = vand.u32 %v623, 2147483648
    %v636 = vor.u32 1.1754944e-38, %v635
    %v637 = vsel %vm634, %v636, %v632
    %v638 = vmul.f32 %v613, %v637
    %v639 = vmin.f32 %v638, 1.0
    %v640 = vmax.f32 %v639, -1.0
    %v641 = vmul.f32 %v274, %v274
    %v642 = vmin.f32 16.0, %v641
    %v643 = vmul.f32 %v642, 2.1237322e-06
    %v644 = vadd.f32 %v643, 0.00028619796
    %v645 = vmul.f32 %v642, %v644
    %v646 = vadd.f32 %v645, 0.0036580483
    %v647 = vmul.f32 %v642, %v646
    %v648 = vadd.f32 %v647, 0.05243302
    %v649 = vmul.f32 %v642, %v648
    %v650 = vadd.f32 %v649, 0.18741608
    %v651 = vmul.f32 %v642, %v650
    %v652 = vadd.f32 %v651, 1.1283791
    %v653 = vmul.f32 %v274, %v652
    %v654 = vmul.f32 %v642, 3.8918573e-05
    %v655 = vadd.f32 %v654, 0.001143296
    %v656 = vmul.f32 %v642, %v655
    %v657 = vadd.f32 %v656, 0.014752088
    %v658 = vmul.f32 %v642, %v657
    %v659 = vadd.f32 %v658, 0.112945676
    %v660 = vmul.f32 %v642, %v659
    %v661 = vadd.f32 %v660, 0.4994258
    %v662 = vmul.f32 %v642, %v661
    %v663 = vadd.f32 %v662, 1.0
    %v664 = vrcp.pop %v663
    %v665 = vmul.f32 %v663, %v664
    %v666 = vsub.f32 1.0, %v665
    %v667 = vmul.f32 %v664, %v666
    %v668 = vadd.f32 %v664, %v667
    %vm669 = vweird.f32 %v663
    %vm670 = vweird.f32 %v664
    %vm671 = vmor %vm669, %vm670
    %v672 = vsel %vm671, %v664, %v668
    %v673 = vand.u32 2147483647, %v663
    %vm674 = vcmp.eq.f32.partialorder %v673, 8.507059e+37
    %v675 = vand.u32 %v663, 2147483648
    %v676 = vor.u32 1.1754944e-38, %v675
    %v677 = vsel %vm674, %v676, %v672
    %v678 = vmul.f32 %v653, %v677
    %v679 = vmin.f32 %v678, 1.0
    %v680 = vmax.f32 %v679, -1.0
    %v681 = vmul.f32 %v275, %v275
    %v682 = vmin.f32 16.0, %v681
    %v683 = vmul.f32 %v682, 2.1237322e-06
    %v684 = vadd.f32 %v683, 0.00028619796
    %v685 = vmul.f32 %v682, %v684
    %v686 = vadd.f32 %v685, 0.0036580483
    %v687 = vmul.f32 %v682, %v686
    %v688 = vadd.f32 %v687, 0.05243302
    %v689 = vmul.f32 %v682, %v688
    %v690 = vadd.f32 %v689, 0.18741608
    %v691 = vmul.f32 %v682, %v690
    %v692 = vadd.f32 %v691, 1.1283791
    %v693 = vmul.f32 %v275, %v692
    %v694 = vmul.f32 %v682, 3.8918573e-05
    %v695 = vadd.f32 %v694, 0.001143296
    %v696 = vmul.f32 %v682, %v695
    %v697 = vadd.f32 %v696, 0.014752088
    %v698 = vmul.f32 %v682, %v697
    %v699 = vadd.f32 %v698, 0.112945676
    %v700 = vmul.f32 %v682, %v699
    %v701 = vadd.f32 %v700, 0.4994258
    %v702 = vmul.f32 %v682, %v701
    %v703 = vadd.f32 %v702, 1.0
    %v704 = vrcp.pop %v703
    %v705 = vmul.f32 %v703, %v704
    %v706 = vsub.f32 1.0, %v705
    %v707 = vmul.f32 %v704, %v706
    %v708 = vadd.f32 %v704, %v707
    %vm709 = vweird.f32 %v703
    %vm710 = vweird.f32 %v704
    %vm711 = vmor %vm709, %vm710
    %v712 = vsel %vm711, %v704, %v708
    %v713 = vand.u32 2147483647, %v703
    %vm714 = vcmp.eq.f32.partialorder %v713, 8.507059e+37
    %v715 = vand.u32 %v703, 2147483648
    %v716 = vor.u32 1.1754944e-38, %v715
    %v717 = vsel %vm714, %v716, %v712
    %v718 = vmul.f32 %v693, %v717
    %v719 = vmin.f32 %v718, 1.0
    %v720 = vmax.f32 %v719, -1.0
    %v721 = vmul.f32 %v276, %v276
    %v722 = vmin.f32 16.0, %v721
    %v723 = vmul.f32 %v722, 2.1237322e-06
    %v724 = vadd.f32 %v723, 0.00028619796
    %v725 = vmul.f32 %v722, %v724
    %v726 = vadd.f32 %v725, 0.0036580483
    %v727 = vmul.f32 %v722, %v726
    %v728 = vadd.f32 %v727, 0.05243302
    %v729 = vmul.f32 %v722, %v728
    %v730 = vadd.f32 %v729, 0.18741608
    %v731 = vmul.f32 %v722, %v730
    %v732 = vadd.f32 %v731, 1.1283791
    %v733 = vmul.f32 %v276, %v732
    %v734 = vmul.f32 %v722, 3.8918573e-05
    %v735 = vadd.f32 %v734, 0.001143296
    %v736 = vmul.f32 %v722, %v735
    %v737 = vadd.f32 %v736, 0.014752088
    %v738 = vmul.f32 %v722, %v737
    %v739 = vadd.f32 %v738, 0.112945676
    %v740 = vmul.f32 %v722, %v739
    %v741 = vadd.f32 %v740, 0.4994258
    %v742 = vmul.f32 %v722, %v741
    %v743 = vadd.f32 %v742, 1.0
    %v744 = vrcp.pop %v743
    %v745 = vmul.f32 %v743, %v744
    %v746 = vsub.f32 1.0, %v745
    %v747 = vmul.f32 %v744, %v746
    %v748 = vadd.f32 %v744, %v747
    %vm749 = vweird.f32 %v743
    %vm750 = vweird.f32 %v744
    %vm751 = vmor %vm749, %vm750
    %v752 = vsel %vm751, %v744, %v748
    %v753 = vand.u32 2147483647, %v743
    %vm754 = vcmp.eq.f32.partialorder %v753, 8.507059e+37
    %v755 = vand.u32 %v743, 2147483648
    %v756 = vor.u32 1.1754944e-38, %v755
    %v757 = vsel %vm754, %v756, %v752
    %v758 = vmul.f32 %v733, %v757
    %v759 = vmin.f32 %v758, 1.0
    %v760 = vmax.f32 %v759, -1.0
    %v761 = vmul.f32 %v277, %v277
    %v762 = vmin.f32 16.0, %v761
    %v763 = vmul.f32 %v762, 2.1237322e-06
    %v764 = vadd.f32 %v763, 0.00028619796
    %v765 = vmul.f32 %v762, %v764
    %v766 = vadd.f32 %v765, 0.0036580483
    %v767 = vmul.f32 %v762, %v766
    %v768 = vadd.f32 %v767, 0.05243302
    %v769 = vmul.f32 %v762, %v768
    %v770 = vadd.f32 %v769, 0.18741608
    %v771 = vmul.f32 %v762, %v770
    %v772 = vadd.f32 %v771, 1.1283791
    %v773 = vmul.f32 %v277, %v772
    %v774 = vmul.f32 %v762, 3.8918573e-05
    %v775 = vadd.f32 %v774, 0.001143296
    %v776 = vmul.f32 %v762, %v775
    %v777 = vadd.f32 %v776, 0.014752088
    %v778 = vmul.f32 %v762, %v777
    %v779 = vadd.f32 %v778, 0.112945676
    %v780 = vmul.f32 %v762, %v779
    %v781 = vadd.f32 %v780, 0.4994258
    %v782 = vmul.f32 %v762, %v781
    %v783 = vadd.f32 %v782, 1.0
    %v784 = vrcp.pop %v783
    %v785 = vmul.f32 %v783, %v784
    %v786 = vsub.f32 1.0, %v785
    %v787 = vmul.f32 %v784, %v786
    %v788 = vadd.f32 %v784, %v787
    %vm789 = vweird.f32 %v783
    %vm790 = vweird.f32 %v784
    %vm791 = vmor %vm789, %vm790
    %v792 = vsel %vm791, %v784, %v788
    %v793 = vand.u32 2147483647, %v783
    %vm794 = vcmp.eq.f32.partialorder %v793, 8.507059e+37
    %v795 = vand.u32 %v783, 2147483648
    %v796 = vor.u32 1.1754944e-38, %v795
    %v797 = vsel %vm794, %v796, %v792
    %v798 = vmul.f32 %v773, %v797
    %v799 = vmin.f32 %v798, 1.0
    %v800 = vmax.f32 %v799, -1.0
    %v801 = vmul.f32 %v278, %v278
    %v802 = vmin.f32 16.0, %v801
    %v803 = vmul.f32 %v802, 2.1237322e-06
    %v804 = vadd.f32 %v803, 0.00028619796
    %v805 = vmul.f32 %v802, %v804
    %v806 = vadd.f32 %v805, 0.0036580483
    %v807 = vmul.f32 %v802, %v806
    %v808 = vadd.f32 %v807, 0.05243302
    %v809 = vmul.f32 %v802, %v808
    %v810 = vadd.f32 %v809, 0.18741608
    %v811 = vmul.f32 %v802, %v810
    %v812 = vadd.f32 %v811, 1.1283791
    %v813 = vmul.f32 %v278, %v812
    %v814 = vmul.f32 %v802, 3.8918573e-05
    %v815 = vadd.f32 %v814, 0.001143296
    %v816 = vmul.f32 %v802, %v815
    %v817 = vadd.f32 %v816, 0.014752088
    %v818 = vmul.f32 %v802, %v817
    %v819 = vadd.f32 %v818, 0.112945676
    %v820 = vmul.f32 %v802, %v819
    %v821 = vadd.f32 %v820, 0.4994258
    %v822 = vmul.f32 %v802, %v821
    %v823 = vadd.f32 %v822, 1.0
    %v824 = vrcp.pop %v823
    %v825 = vmul.f32 %v823, %v824
    %v826 = vsub.f32 1.0, %v825
    %v827 = vmul.f32 %v824, %v826
    %v828 = vadd.f32 %v824, %v827
    %vm829 = vweird.f32 %v823
    %vm830 = vweird.f32 %v824
    %vm831 = vmor %vm829, %vm830
    %v832 = vsel %vm831, %v824, %v828
    %v833 = vand.u32 2147483647, %v823
    %vm834 = vcmp.eq.f32.partialorder %v833, 8.507059e+37
    %v835 = vand.u32 %v823, 2147483648
    %v836 = vor.u32 1.1754944e-38, %v835
    %v837 = vsel %vm834, %v836, %v832
    %v838 = vmul.f32 %v813, %v837
    %v839 = vmin.f32 %v838, 1.0
    %v840 = vmax.f32 %v839, -1.0
    %v841 = vmul.f32 %v279, %v279
    %v842 = vmin.f32 16.0, %v841
    %v843 = vmul.f32 %v842, 2.1237322e-06
    %v844 = vadd.f32 %v843, 0.00028619796
    %v845 = vmul.f32 %v842, %v844
    %v846 = vadd.f32 %v845, 0.0036580483
    %v847 = vmul.f32 %v842, %v846
    %v848 = vadd.f32 %v847, 0.05243302
    %v849 = vmul.f32 %v842, %v848
    %v850 = vadd.f32 %v849, 0.18741608
    %v851 = vmul.f32 %v842, %v850
    %v852 = vadd.f32 %v851, 1.1283791
    %v853 = vmul.f32 %v279, %v852
    %v854 = vmul.f32 %v842, 3.8918573e-05
    %v855 = vadd.f32 %v854, 0.001143296
    %v856 = vmul.f32 %v842, %v855
    %v857 = vadd.f32 %v856, 0.014752088
    %v858 = vmul.f32 %v842, %v857
    %v859 = vadd.f32 %v858, 0.112945676
    %v860 = vmul.f32 %v842, %v859
    %v861 = vadd.f32 %v860, 0.4994258
    %v862 = vmul.f32 %v842, %v861
    %v863 = vadd.f32 %v862, 1.0
    %v864 = vrcp.pop %v863
    %v865 = vmul.f32 %v863, %v864
    %v866 = vsub.f32 1.0, %v865
    %v867 = vmul.f32 %v864, %v866
    %v868 = vadd.f32 %v864, %v867
    %vm869 = vweird.f32 %v863
    %vm870 = vweird.f32 %v864
    %vm871 = vmor %vm869, %vm870
    %v872 = vsel %vm871, %v864, %v868
    %v873 = vand.u32 2147483647, %v863
    %vm874 = vcmp.eq.f32.partialorder %v873, 8.507059e+37
    %v875 = vand.u32 %v863, 2147483648
    %v876 = vor.u32 1.1754944e-38, %v875
    %v877 = vsel %vm874, %v876, %v872
    %v878 = vmul.f32 %v853, %v877
    %v879 = vmin.f32 %v878, 1.0
    %v880 = vmax.f32 %v879, -1.0
    %v881 = vmul.f32 %v280, %v280
    %v882 = vmin.f32 16.0, %v881
    %v883 = vmul.f32 %v882, 2.1237322e-06
    %v884 = vadd.f32 %v883, 0.00028619796
    %v885 = vmul.f32 %v882, %v884
    %v886 = vadd.f32 %v885, 0.0036580483
    %v887 = vmul.f32 %v882, %v886
    %v888 = vadd.f32 %v887, 0.05243302
    %v889 = vmul.f32 %v882, %v888
    %v890 = vadd.f32 %v889, 0.18741608
    %v891 = vmul.f32 %v882, %v890
    %v892 = vadd.f32 %v891, 1.1283791
    %v893 = vmul.f32 %v280, %v892
    %v894 = vmul.f32 %v882, 3.8918573e-05
    %v895 = vadd.f32 %v894, 0.001143296
    %v896 = vmul.f32 %v882, %v895
    %v897 = vadd.f32 %v896, 0.014752088
    %v898 = vmul.f32 %v882, %v897
    %v899 = vadd.f32 %v898, 0.112945676
    %v900 = vmul.f32 %v882, %v899
    %v901 = vadd.f32 %v900, 0.4994258
    %v902 = vmul.f32 %v882, %v901
    %v903 = vadd.f32 %v902, 1.0
    %v904 = vrcp.pop %v903
    %v905 = vmul.f32 %v903, %v904
    %v906 = vsub.f32 1.0, %v905
    %v907 = vmul.f32 %v904, %v906
    %v908 = vadd.f32 %v904, %v907
    %vm909 = vweird.f32 %v903
    %vm910 = vweird.f32 %v904
    %vm911 = vmor %vm909, %vm910
    %v912 = vsel %vm911, %v904, %v908
    %v913 = vand.u32 2147483647, %v903
    %vm914 = vcmp.eq.f32.partialorder %v913, 8.507059e+37
    %v915 = vand.u32 %v903, 2147483648
    %v916 = vor.u32 1.1754944e-38, %v915
    %v917 = vsel %vm914, %v916, %v912
    %v918 = vmul.f32 %v893, %v917
    %v919 = vmin.f32 %v918, 1.0
    %v920 = vmax.f32 %v919, -1.0
    %v921 = vadd.f32 %v320, 1.0
    %v922 = vadd.f32 %v360, 1.0
    %v923 = vadd.f32 %v400, 1.0
    %v924 = vadd.f32 %v440, 1.0
    %v925 = vadd.f32 %v480, 1.0
    %v926 = vadd.f32 %v520, 1.0
    %v927 = vadd.f32 %v560, 1.0
    %v928 = vadd.f32 %v600, 1.0
    %v929 = vadd.f32 %v640, 1.0
    %v930 = vadd.f32 %v680, 1.0
    %v931 = vadd.f32 %v720, 1.0
    %v932 = vadd.f32 %v760, 1.0
    %v933 = vadd.f32 %v800, 1.0
    %v934 = vadd.f32 %v840, 1.0
    %v935 = vadd.f32 %v880, 1.0
    %v936 = vadd.f32 %v920, 1.0
    %v937 = vmul.f32 %v249, %v921
    %v938 = vmul.f32 %v250, %v922
    %v939 = vmul.f32 %v251, %v923
    %v940 = vmul.f32 %v252, %v924
    %v941 = vmul.f32 %v253, %v925
    %v942 = vmul.f32 %v254, %v926
    %v943 = vmul.f32 %v255, %v927
    %v944 = vmul.f32 %v256, %v928
    %v945 = vmul.f32 %v257, %v929
    %v946 = vmul.f32 %v258, %v930
    %v947 = vmul.f32 %v259, %v931
    %v948 = vmul.f32 %v260, %v932
    %v949 = vmul.f32 %v261, %v933
    %v950 = vmul.f32 %v262, %v934
    %v951 = vmul.f32 %v263, %v935
    %v952 = vmul.f32 %v264, %v936
    %v953 = vlaneseq
    %v954 = vshrl.u32 %v953, 7
    %v955 = vrot.slane %v937, 2
    %v956 = vrot.slane %v938, 2
    %v957 = vrot.slane %v939, 2
    %v958 = vrot.slane %v940, 2
    %v959 = vrot.slane %v941, 2
    %v960 = vrot.slane %v942, 2
    %v961 = vrot.slane %v943, 2
    %v962 = vrot.slane %v944, 2
    %v963 = vrot.slane %v945, 2
    %v964 = vrot.slane %v946, 2
    %v965 = vrot.slane %v947, 2
    %v966 = vrot.slane %v948, 2
    %v967 = vrot.slane %v949, 2
    %v968 = vrot.slane %v950, 2
    %v969 = vrot.slane %v951, 2
    %v970 = vrot.slane %v952, 2
    %v971 = vadd.s32 %v954, 4294967290
    %vm972 = vcmp.ge.s32.totalorder %v971, 0
    %vm973 = vcmp.lt.s32.totalorder %v971, 8
    %vm974 = vmand %vm972, %vm973
    %v975 = vsel %vm974, 1, 0
    %vm976 = vcmp.eq.s32.totalorder %v975, 1
    %v977 = vsel %vm976, %v955, 0.0
    %v978 = vsel %vm976, %v956, 0.0
    %v979 = vsel %vm976, %v957, 0.0
    %v980 = vsel %vm976, %v958, 0.0
    %v981 = vsel %vm976, %v959, 0.0
    %v982 = vsel %vm976, %v960, 0.0
    %v983 = vsel %vm976, %v961, 0.0
    %v984 = vsel %vm976, %v962, 0.0
    %v985 = vsel %vm976, %v963, 0.0
    %v986 = vsel %vm976, %v964, 0.0
    %v987 = vsel %vm976, %v965, 0.0
    %v988 = vsel %vm976, %v966, 0.0
    %v989 = vsel %vm976, %v967, 0.0
    %v990 = vsel %vm976, %v968, 0.0
    %v991 = vsel %vm976, %v969, 0.0
    %v992 = vsel %vm976, %v970, 0.0
    %v993 = vld [vmem:[#allocation7] sm:$0xff]
    %v994 = vmul.f32 %v993, 0.0
    %v995 = vmul.f32 %v977, %v993
    %v996 = vmul.f32 %v978, %v993
    %v997 = vmul.f32 %v985, %v993
    %v998 = vmul.f32 %v986, %v993
    %s999 = scalar_lea.vmem [#allocation7], 8
    %v1000 = vld [vmem:[%s999] sm:$0xff]
    %v1001 = vmul.f32 %v1000, 0.0
    %v1002 = vmul.f32 %v977, %v1000
    %v1003 = vmul.f32 %v978, %v1000
    %v1004 = vmul.f32 %v979, %v1000
    %v1005 = vmul.f32 %v980, %v1000
    %v1006 = vmul.f32 %v981, %v1000
    %v1007 = vmul.f32 %v985, %v1000
    %v1008 = vmul.f32 %v986, %v1000
    %v1009 = vmul.f32 %v987, %v1000
    %v1010 = vmul.f32 %v988, %v1000
    %v1011 = vmul.f32 %v989, %v1000
    %v1012 = vadd.f32 %v994, %v1001
    %v1013 = vadd.f32 %v994, %v1002
    %v1014 = vadd.f32 %v994, %v1003
    %v1015 = vadd.f32 %v994, %v1004
    %v1016 = vadd.f32 %v995, %v1005
    %v1017 = vadd.f32 %v996, %v1006
    %v1018 = vadd.f32 %v994, %v1007
    %v1019 = vadd.f32 %v994, %v1008
    %v1020 = vadd.f32 %v994, %v1009
    %v1021 = vadd.f32 %v997, %v1010
    %v1022 = vadd.f32 %v998, %v1011
    %s1023 = scalar_lea.vmem [#allocation7], 16
    %v1024 = vld [vmem:[%s1023] sm:$0xff]
    %v1025 = vmul.f32 %v977, %v1024
    %v1026 = vmul.f32 %v978, %v1024
    %v1027 = vmul.f32 %v979, %v1024
    %v1028 = vmul.f32 %v980, %v1024
    %v1029 = vmul.f32 %v981, %v1024
    %v1030 = vmul.f32 %v982, %v1024
    %v1031 = vmul.f32 %v983, %v1024
    %v1032 = vmul.f32 %v984, %v1024
    %v1033 = vmul.f32 %v985, %v1024
    %v1034 = vmul.f32 %v986, %v1024
    %v1035 = vmul.f32 %v987, %v1024
    %v1036 = vmul.f32 %v988, %v1024
    %v1037 = vmul.f32 %v989, %v1024
    %v1038 = vmul.f32 %v990, %v1024
    %v1039 = vmul.f32 %v991, %v1024
    %v1040 = vmul.f32 %v992, %v1024
    %v1041 = vadd.f32 %v1012, %v1025
    %v1042 = vadd.f32 %v1012, %v1026
    %v1043 = vadd.f32 %v1012, %v1027
    %v1044 = vadd.f32 %v1013, %v1028
    %v1045 = vadd.f32 %v1014, %v1029
    %v1046 = vadd.f32 %v1015, %v1030
    %v1047 = vadd.f32 %v1016, %v1031
    %v1048 = vadd.f32 %v1017, %v1032
    %v1049 = vadd.f32 %v1012, %v1033
    %v1050 = vadd.f32 %v1012, %v1034
    %v1051 = vadd.f32 %v1012, %v1035
    %v1052 = vadd.f32 %v1018, %v1036
    %v1053 = vadd.f32 %v1019, %v1037
    %v1054 = vadd.f32 %v1020, %v1038
    %v1055 = vadd.f32 %v1021, %v1039
    %v1056 = vadd.f32 %v1022, %v1040
    %s1057 = scalar_lea.vmem [#allocation7], 24
    %v1058 = vld [vmem:[%s1057] sm:$0xff]
    %v1059 = vmul.f32 %v980, %v1058
    %v1060 = vmul.f32 %v981, %v1058
    %v1061 = vmul.f32 %v982, %v1058
    %v1062 = vmul.f32 %v983, %v1058
    %v1063 = vmul.f32 %v984, %v1058
    %v1064 = vmul.f32 %v1058, 0.0
    %v1065 = vmul.f32 %v988, %v1058
    %v1066 = vmul.f32 %v989, %v1058
    %v1067 = vmul.f32 %v990, %v1058
    %v1068 = vmul.f32 %v991, %v1058
    %v1069 = vmul.f32 %v992, %v1058
    %v1070 = vadd.f32 %v1041, %v1059
    %v1071 = vadd.f32 %v1042, %v1060
    %v1072 = vadd.f32 %v1043, %v1061
    %v1073 = vadd.f32 %v1044, %v1062
    %v1074 = vadd.f32 %v1045, %v1063
    %v1075 = vadd.f32 %v1046, %v1064
    %v1076 = vadd.f32 %v1047, %v1064
    %v1077 = vadd.f32 %v1048, %v1064
    %v1078 = vadd.f32 %v1049, %v1065
    %v1079 = vadd.f32 %v1050, %v1066
    %v1080 = vadd.f32 %v1051, %v1067
    %v1081 = vadd.f32 %v1052, %v1068
    %v1082 = vadd.f32 %v1053, %v1069
    %v1083 = vadd.f32 %v1054, %v1064
    %v1084 = vadd.f32 %v1055, %v1064
    %v1085 = vadd.f32 %v1056, %v1064
    %s1086 = scalar_lea.vmem [#allocation7], 32
    %v1087 = vld [vmem:[%s1086] sm:$0xff]
    %v1088 = vmul.f32 %v983, %v1087
    %v1089 = vmul.f32 %v984, %v1087
    %v1090 = vmul.f32 %v1087, 0.0
    %v1091 = vmul.f32 %v991, %v1087
    %v1092 = vmul.f32 %v992, %v1087
    %v1093 = vadd.f32 %v1070, %v1088
    %v1094 = vadd.f32 %v1071, %v1089
    %v1095 = vadd.f32 %v1072, %v1090
    %v1096 = vadd.f32 %v1073, %v1090
    %v1097 = vadd.f32 %v1074, %v1090
    %v1098 = vadd.f32 %v1075, %v1090
    %v1099 = vadd.f32 %v1076, %v1090
    %v1100 = vadd.f32 %v1077, %v1090
    %v1101 = vadd.f32 %v1078, %v1091
    %v1102 = vadd.f32 %v1079, %v1092
    %v1103 = vadd.f32 %v1080, %v1090
    %v1104 = vadd.f32 %v1081, %v1090
    %v1105 = vadd.f32 %v1082, %v1090
    %v1106 = vadd.f32 %v1083, %v1090
    %v1107 = vadd.f32 %v1084, %v1090
    %v1108 = vadd.f32 %v1085, %v1090
    %v1109 = vrot.slane %v937, 5
    %v1110 = vrot.slane %v938, 5
    %v1111 = vrot.slane %v939, 5
    %v1112 = vrot.slane %v940, 5
    %v1113 = vrot.slane %v941, 5
    %v1114 = vrot.slane %v942, 5
    %v1115 = vrot.slane %v943, 5
    %v1116 = vrot.slane %v944, 5
    %v1117 = vrot.slane %v945, 5
    %v1118 = vrot.slane %v946, 5
    %v1119 = vrot.slane %v947, 5
    %v1120 = vrot.slane %v948, 5
    %v1121 = vrot.slane %v949, 5
    %v1122 = vrot.slane %v950, 5
    %v1123 = vrot.slane %v951, 5
    %v1124 = vrot.slane %v952, 5
    %v1125 = vadd.s32 %v954, 4294967293
    %vm1126 = vcmp.ge.s32.totalorder %v1125, 0
    %vm1127 = vcmp.lt.s32.totalorder %v1125, 8
    %vm1128 = vmand %vm1126, %vm1127
    %v1129 = vsel %vm1128, 1, 0
    %vm1130 = vcmp.eq.s32.totalorder %v1129, 1
    %v1131 = vsel %vm1130, %v1109, 0.0
    %v1132 = vsel %vm1130, %v1110, 0.0
    %v1133 = vsel %vm1130, %v1111, 0.0
    %v1134 = vsel %vm1130, %v1112, 0.0
    %v1135 = vsel %vm1130, %v1113, 0.0
    %v1136 = vsel %vm1130, %v1114, 0.0
    %v1137 = vsel %vm1130, %v1115, 0.0
    %v1138 = vsel %vm1130, %v1116, 0.0
    %v1139 = vsel %vm1130, %v1117, 0.0
    %v1140 = vsel %vm1130, %v1118, 0.0
    %v1141 = vsel %vm1130, %v1119, 0.0
    %v1142 = vsel %vm1130, %v1120, 0.0
    %v1143 = vsel %vm1130, %v1121, 0.0
    %v1144 = vsel %vm1130, %v1122, 0.0
    %v1145 = vsel %vm1130, %v1123, 0.0
    %v1146 = vsel %vm1130, %v1124, 0.0
    %s1147 = scalar_lea.vmem [#allocation7], 40
    %v1148 = vld [vmem:[%s1147] sm:$0xff]
    %v1149 = vmul.f32 %v1148, 0.0
    %v1150 = vmul.f32 %v1131, %v1148
    %v1151 = vmul.f32 %v1132, %v1148
    %v1152 = vmul.f32 %v1139, %v1148
    %v1153 = vmul.f32 %v1140, %v1148
    %v1154 = vadd.f32 %v1093, %v1149
    %v1155 = vadd.f32 %v1094, %v1149
    %v1156 = vadd.f32 %v1095, %v1149
    %v1157 = vadd.f32 %v1096, %v1149
    %v1158 = vadd.f32 %v1097, %v1149
    %v1159 = vadd.f32 %v1098, %v1149
    %v1160 = vadd.f32 %v1099, %v1150
    %v1161 = vadd.f32 %v1100, %v1151
    %v1162 = vadd.f32 %v1101, %v1149
    %v1163 = vadd.f32 %v1102, %v1149
    %v1164 = vadd.f32 %v1103, %v1149
    %v1165 = vadd.f32 %v1104, %v1149
    %v1166 = vadd.f32 %v1105, %v1149
    %v1167 = vadd.f32 %v1106, %v1149
    %v1168 = vadd.f32 %v1107, %v1152
    %v1169 = vadd.f32 %v1108, %v1153
    %s1170 = scalar_lea.vmem [#allocation7], 48
    %v1171 = vld [vmem:[%s1170] sm:$0xff]
    %v1172 = vmul.f32 %v1171, 0.0
    %v1173 = vmul.f32 %v1131, %v1171
    %v1174 = vmul.f32 %v1132, %v1171
    %v1175 = vmul.f32 %v1133, %v1171
    %v1176 = vmul.f32 %v1134, %v1171
    %v1177 = vmul.f32 %v1135, %v1171
    %v1178 = vmul.f32 %v1139, %v1171
    %v1179 = vmul.f32 %v1140, %v1171
    %v1180 = vmul.f32 %v1141, %v1171
    %v1181 = vmul.f32 %v1142, %v1171
    %v1182 = vmul.f32 %v1143, %v1171
    %v1183 = vadd.f32 %v1154, %v1172
    %v1184 = vadd.f32 %v1155, %v1172
    %v1185 = vadd.f32 %v1156, %v1172
    %v1186 = vadd.f32 %v1157, %v1173
    %v1187 = vadd.f32 %v1158, %v1174
    %v1188 = vadd.f32 %v1159, %v1175
    %v1189 = vadd.f32 %v1160, %v1176
    %v1190 = vadd.f32 %v1161, %v1177
    %v1191 = vadd.f32 %v1162, %v1172
    %v1192 = vadd.f32 %v1163, %v1172
    %v1193 = vadd.f32 %v1164, %v1172
    %v1194 = vadd.f32 %v1165, %v1178
    %v1195 = vadd.f32 %v1166, %v1179
    %v1196 = vadd.f32 %v1167, %v1180
    %v1197 = vadd.f32 %v1168, %v1181
    %v1198 = vadd.f32 %v1169, %v1182
    %s1199 = scalar_lea.vmem [#allocation7], 56
    %v1200 = vld [vmem:[%s1199] sm:$0xff]
    %v1201 = vmul.f32 %v1131, %v1200
    %v1202 = vmul.f32 %v1132, %v1200
    %v1203 = vmul.f32 %v1133, %v1200
    %v1204 = vmul.f32 %v1134, %v1200
    %v1205 = vmul.f32 %v1135, %v1200
    %v1206 = vmul.f32 %v1136, %v1200
    %v1207 = vmul.f32 %v1137, %v1200
    %v1208 = vmul.f32 %v1138, %v1200
    %v1209 = vmul.f32 %v1139, %v1200
    %v1210 = vmul.f32 %v1140, %v1200
    %v1211 = vmul.f32 %v1141, %v1200
    %v1212 = vmul.f32 %v1142, %v1200
    %v1213 = vmul.f32 %v1143, %v1200
    %v1214 = vmul.f32 %v1144, %v1200
    %v1215 = vmul.f32 %v1145, %v1200
    %v1216 = vmul.f32 %v1146, %v1200
    %v1217 = vadd.f32 %v1183, %v1201
    %v1218 = vadd.f32 %v1184, %v1202
    %v1219 = vadd.f32 %v1185, %v1203
    %v1220 = vadd.f32 %v1186, %v1204
    %v1221 = vadd.f32 %v1187, %v1205
    %v1222 = vadd.f32 %v1188, %v1206
    %v1223 = vadd.f32 %v1189, %v1207
    %v1224 = vadd.f32 %v1190, %v1208
    %v1225 = vadd.f32 %v1191, %v1209
    %v1226 = vadd.f32 %v1192, %v1210
    %v1227 = vadd.f32 %v1193, %v1211
    %v1228 = vadd.f32 %v1194, %v1212
    %v1229 = vadd.f32 %v1195, %v1213
    %v1230 = vadd.f32 %v1196, %v1214
    %v1231 = vadd.f32 %v1197, %v1215
    %v1232 = vadd.f32 %v1198, %v1216
    %s1233 = scalar_lea.vmem [#allocation7], 64
    %v1234 = vld [vmem:[%s1233] sm:$0xff]
    %v1235 = vmul.f32 %v1134, %v1234
    %v1236 = vmul.f32 %v1135, %v1234
    %v1237 = vmul.f32 %v1136, %v1234
    %v1238 = vmul.f32 %v1137, %v1234
    %v1239 = vmul.f32 %v1138, %v1234
    %v1240 = vmul.f32 %v1234, 0.0
    %v1241 = vmul.f32 %v1142, %v1234
    %v1242 = vmul.f32 %v1143, %v1234
    %v1243 = vmul.f32 %v1144, %v1234
    %v1244 = vmul.f32 %v1145, %v1234
    %v1245 = vmul.f32 %v1146, %v1234
    %v1246 = vadd.f32 %v1217, %v1235
    %v1247 = vadd.f32 %v1218, %v1236
    %v1248 = vadd.f32 %v1219, %v1237
    %v1249 = vadd.f32 %v1220, %v1238
    %v1250 = vadd.f32 %v1221, %v1239
    %v1251 = vadd.f32 %v1222, %v1240
    %v1252 = vadd.f32 %v1223, %v1240
    %v1253 = vadd.f32 %v1224, %v1240
    %v1254 = vadd.f32 %v1225, %v1241
    %v1255 = vadd.f32 %v1226, %v1242
    %v1256 = vadd.f32 %v1227, %v1243
    %v1257 = vadd.f32 %v1228, %v1244
    %v1258 = vadd.f32 %v1229, %v1245
    %v1259 = vadd.f32 %v1230, %v1240
    %v1260 = vadd.f32 %v1231, %v1240
    %v1261 = vadd.f32 %v1232, %v1240
    %s1262 = scalar_lea.vmem [#allocation7], 72
    %v1263 = vld [vmem:[%s1262] sm:$0xff]
    %v1264 = vmul.f32 %v1137, %v1263
    %v1265 = vmul.f32 %v1138, %v1263
    %v1266 = vmul.f32 %v1263, 0.0
    %v1267 = vmul.f32 %v1145, %v1263
    %v1268 = vmul.f32 %v1146, %v1263
    %v1269 = vadd.f32 %v1246, %v1264
    %v1270 = vadd.f32 %v1247, %v1265
    %v1271 = vadd.f32 %v1248, %v1266
    %v1272 = vadd.f32 %v1249, %v1266
    %v1273 = vadd.f32 %v1250, %v1266
    %v1274 = vadd.f32 %v1251, %v1266
    %v1275 = vadd.f32 %v1252, %v1266
    %v1276 = vadd.f32 %v1253, %v1266
    %v1277 = vadd.f32 %v1254, %v1267
    %v1278 = vadd.f32 %v1255, %v1268
    %v1279 = vadd.f32 %v1256, %v1266
    %v1280 = vadd.f32 %v1257, %v1266
    %v1281 = vadd.f32 %v1258, %v1266
    %v1282 = vadd.f32 %v1259, %v1266
    %v1283 = vadd.f32 %v1260, %v1266
    %v1284 = vadd.f32 %v1261, %v1266
    %s1285 = scalar_lea.vmem [#allocation7], 80
    %v1286 = vld [vmem:[%s1285] sm:$0xff]
    %v1287 = vmul.f32 %v1286, 0.0
    %v1288 = vmul.f32 %v937, %v1286
    %v1289 = vmul.f32 %v938, %v1286
    %v1290 = vmul.f32 %v945, %v1286
    %v1291 = vmul.f32 %v946, %v1286
    %v1292 = vadd.f32 %v1269, %v1287
    %v1293 = vadd.f32 %v1270, %v1287
    %v1294 = vadd.f32 %v1271, %v1287
    %v1295 = vadd.f32 %v1272, %v1287
    %v1296 = vadd.f32 %v1273, %v1287
    %v1297 = vadd.f32 %v1274, %v1287
    %v1298 = vadd.f32 %v1275, %v1288
    %v1299 = vadd.f32 %v1276, %v1289
    %v1300 = vadd.f32 %v1277, %v1287
    %v1301 = vadd.f32 %v1278, %v1287
    %v1302 = vadd.f32 %v1279, %v1287
    %v1303 = vadd.f32 %v1280, %v1287
    %v1304 = vadd.f32 %v1281, %v1287
    %v1305 = vadd.f32 %v1282, %v1287
    %v1306 = vadd.f32 %v1283, %v1290
    %v1307 = vadd.f32 %v1284, %v1291
    %s1308 = scalar_lea.vmem [#allocation7], 88
    %v1309 = vld [vmem:[%s1308] sm:$0xff]
    %v1310 = vmul.f32 %v1309, 0.0
    %v1311 = vmul.f32 %v937, %v1309
    %v1312 = vmul.f32 %v938, %v1309
    %v1313 = vmul.f32 %v939, %v1309
    %v1314 = vmul.f32 %v940, %v1309
    %v1315 = vmul.f32 %v941, %v1309
    %v1316 = vmul.f32 %v945, %v1309
    %v1317 = vmul.f32 %v946, %v1309
    %v1318 = vmul.f32 %v947, %v1309
    %v1319 = vmul.f32 %v948, %v1309
    %v1320 = vmul.f32 %v949, %v1309
    %v1321 = vadd.f32 %v1292, %v1310
    %v1322 = vadd.f32 %v1293, %v1310
    %v1323 = vadd.f32 %v1294, %v1310
    %v1324 = vadd.f32 %v1295, %v1311
    %v1325 = vadd.f32 %v1296, %v1312
    %v1326 = vadd.f32 %v1297, %v1313
    %v1327 = vadd.f32 %v1298, %v1314
    %v1328 = vadd.f32 %v1299, %v1315
    %v1329 = vadd.f32 %v1300, %v1310
    %v1330 = vadd.f32 %v1301, %v1310
    %v1331 = vadd.f32 %v1302, %v1310
    %v1332 = vadd.f32 %v1303, %v1316
    %v1333 = vadd.f32 %v1304, %v1317
    %v1334 = vadd.f32 %v1305, %v1318
    %v1335 = vadd.f32 %v1306, %v1319
    %v1336 = vadd.f32 %v1307, %v1320
    %s1337 = scalar_lea.vmem [#allocation7], 96
    %v1338 = vld [vmem:[%s1337] sm:$0xff]
    %v1339 = vmul.f32 %v937, %v1338
    %v1340 = vmul.f32 %v938, %v1338
    %v1341 = vmul.f32 %v939, %v1338
    %v1342 = vmul.f32 %v940, %v1338
    %v1343 = vmul.f32 %v941, %v1338
    %v1344 = vmul.f32 %v942, %v1338
    %v1345 = vmul.f32 %v943, %v1338
    %v1346 = vmul.f32 %v944, %v1338
    %v1347 = vmul.f32 %v945, %v1338
    %v1348 = vmul.f32 %v946, %v1338
    %v1349 = vmul.f32 %v947, %v1338
    %v1350 = vmul.f32 %v948, %v1338
    %v1351 = vmul.f32 %v949, %v1338
    %v1352 = vmul.f32 %v950, %v1338
    %v1353 = vmul.f32 %v951, %v1338
    %v1354 = vmul.f32 %v952, %v1338
    %v1355 = vadd.f32 %v1321, %v1339
    %v1356 = vadd.f32 %v1322, %v1340
    %v1357 = vadd.f32 %v1323, %v1341
    %v1358 = vadd.f32 %v1324, %v1342
    %v1359 = vadd.f32 %v1325, %v1343
    %v1360 = vadd.f32 %v1326, %v1344
    %v1361 = vadd.f32 %v1327, %v1345
    %v1362 = vadd.f32 %v1328, %v1346
    %v1363 = vadd.f32 %v1329, %v1347
    %v1364 = vadd.f32 %v1330, %v1348
    %v1365 = vadd.f32 %v1331, %v1349
    %v1366 = vadd.f32 %v1332, %v1350
    %v1367 = vadd.f32 %v1333, %v1351
    %v1368 = vadd.f32 %v1334, %v1352
    %v1369 = vadd.f32 %v1335, %v1353
    %v1370 = vadd.f32 %v1336, %v1354
    %s1371 = scalar_lea.vmem [#allocation7], 104
    %v1372 = vld [vmem:[%s1371] sm:$0xff]
    %v1373 = vmul.f32 %v940, %v1372
    %v1374 = vmul.f32 %v941, %v1372
    %v1375 = vmul.f32 %v942, %v1372
    %v1376 = vmul.f32 %v943, %v1372
    %v1377 = vmul.f32 %v944, %v1372
    %v1378 = vmul.f32 %v1372, 0.0
    %v1379 = vmul.f32 %v948, %v1372
    %v1380 = vmul.f32 %v949, %v1372
    %v1381 = vmul.f32 %v950, %v1372
    %v1382 = vmul.f32 %v951, %v1372
    %v1383 = vmul.f32 %v952, %v1372
    %v1384 = vadd.f32 %v1355, %v1373
    %v1385 = vadd.f32 %v1356, %v1374
    %v1386 = vadd.f32 %v1357, %v1375
    %v1387 = vadd.f32 %v1358, %v1376
    %v1388 = vadd.f32 %v1359, %v1377
    %v1389 = vadd.f32 %v1360, %v1378
    %v1390 = vadd.f32 %v1361, %v1378
    %v1391 = vadd.f32 %v1362, %v1378
    %v1392 = vadd.f32 %v1363, %v1379
    %v1393 = vadd.f32 %v1364, %v1380
    %v1394 = vadd.f32 %v1365, %v1381
    %v1395 = vadd.f32 %v1366, %v1382
    %v1396 = vadd.f32 %v1367, %v1383
    %v1397 = vadd.f32 %v1368, %v1378
    %v1398 = vadd.f32 %v1369, %v1378
    %v1399 = vadd.f32 %v1370, %v1378
    %s1400 = scalar_lea.vmem [#allocation7], 112
    %v1401 = vld [vmem:[%s1400] sm:$0xff]
    %v1402 = vmul.f32 %v943, %v1401
    %v1403 = vmul.f32 %v944, %v1401
    %v1404 = vmul.f32 %v1401, 0.0
    %v1405 = vmul.f32 %v951, %v1401
    %v1406 = vmul.f32 %v952, %v1401
    %v1407 = vadd.f32 %v1384, %v1402
    %v1408 = vadd.f32 %v1385, %v1403
    %v1409 = vadd.f32 %v1386, %v1404
    %v1410 = vadd.f32 %v1387, %v1404
    %v1411 = vadd.f32 %v1388, %v1404
    %v1412 = vadd.f32 %v1389, %v1404
    %v1413 = vadd.f32 %v1390, %v1404
    %v1414 = vadd.f32 %v1391, %v1404
    %v1415 = vadd.f32 %v1392, %v1405
    %v1416 = vadd.f32 %v1393, %v1406
    %v1417 = vadd.f32 %v1394, %v1404
    %v1418 = vadd.f32 %v1395, %v1404
    %v1419 = vadd.f32 %v1396, %v1404
    %v1420 = vadd.f32 %v1397, %v1404
    %v1421 = vadd.f32 %v1398, %v1404
    %v1422 = vadd.f32 %v1399, %v1404
    %v1423 = vrot.slane %v937, 3
    %v1424 = vrot.slane %v938, 3
    %v1425 = vrot.slane %v939, 3
    %v1426 = vrot.slane %v940, 3
    %v1427 = vrot.slane %v941, 3
    %v1428 = vrot.slane %v942, 3
    %v1429 = vrot.slane %v943, 3
    %v1430 = vrot.slane %v944, 3
    %v1431 = vrot.slane %v945, 3
    %v1432 = vrot.slane %v946, 3
    %v1433 = vrot.slane %v947, 3
    %v1434 = vrot.slane %v948, 3
    %v1435 = vrot.slane %v949, 3
    %v1436 = vrot.slane %v950, 3
    %v1437 = vrot.slane %v951, 3
    %v1438 = vrot.slane %v952, 3
    %v1439 = vadd.s32 %v954, 3
    %vm1440 = vcmp.ge.s32.totalorder %v1439, 0
    %vm1441 = vcmp.lt.s32.totalorder %v1439, 8
    %vm1442 = vmand %vm1440, %vm1441
    %v1443 = vsel %vm1442, 1, 0
    %vm1444 = vcmp.eq.s32.totalorder %v1443, 1
    %v1445 = vsel %vm1444, %v1423, 0.0
    %v1446 = vsel %vm1444, %v1424, 0.0
    %v1447 = vsel %vm1444, %v1425, 0.0
    %v1448 = vsel %vm1444, %v1426, 0.0
    %v1449 = vsel %vm1444, %v1427, 0.0
    %v1450 = vsel %vm1444, %v1428, 0.0
    %v1451 = vsel %vm1444, %v1429, 0.0
    %v1452 = vsel %vm1444, %v1430, 0.0
    %v1453 = vsel %vm1444, %v1431, 0.0
    %v1454 = vsel %vm1444, %v1432, 0.0
    %v1455 = vsel %vm1444, %v1433, 0.0
    %v1456 = vsel %vm1444, %v1434, 0.0
    %v1457 = vsel %vm1444, %v1435, 0.0
    %v1458 = vsel %vm1444, %v1436, 0.0
    %v1459 = vsel %vm1444, %v1437, 0.0
    %v1460 = vsel %vm1444, %v1438, 0.0
    %s1461 = scalar_lea.vmem [#allocation7], 120
    %v1462 = vld [vmem:[%s1461] sm:$0xff]
    %v1463 = vmul.f32 %v1462, 0.0
    %v1464 = vmul.f32 %v1445, %v1462
    %v1465 = vmul.f32 %v1446, %v1462
    %v1466 = vmul.f32 %v1453, %v1462
    %v1467 = vmul.f32 %v1454, %v1462
    %v1468 = vadd.f32 %v1407, %v1463
    %v1469 = vadd.f32 %v1408, %v1463
    %v1470 = vadd.f32 %v1409, %v1463
    %v1471 = vadd.f32 %v1410, %v1463
    %v1472 = vadd.f32 %v1411, %v1463
    %v1473 = vadd.f32 %v1412, %v1463
    %v1474 = vadd.f32 %v1413, %v1464
    %v1475 = vadd.f32 %v1414, %v1465
    %v1476 = vadd.f32 %v1415, %v1463
    %v1477 = vadd.f32 %v1416, %v1463
    %v1478 = vadd.f32 %v1417, %v1463
    %v1479 = vadd.f32 %v1418, %v1463
    %v1480 = vadd.f32 %v1419, %v1463
    %v1481 = vadd.f32 %v1420, %v1463
    %v1482 = vadd.f32 %v1421, %v1466
    %v1483 = vadd.f32 %v1422, %v1467
    %s1484 = scalar_lea.vmem [#allocation7], 128
    %v1485 = vld [vmem:[%s1484] sm:$0xff]
    %v1486 = vmul.f32 %v1485, 0.0
    %v1487 = vmul.f32 %v1445, %v1485
    %v1488 = vmul.f32 %v1446, %v1485
    %v1489 = vmul.f32 %v1447, %v1485
    %v1490 = vmul.f32 %v1448, %v1485
    %v1491 = vmul.f32 %v1449, %v1485
    %v1492 = vmul.f32 %v1453, %v1485
    %v1493 = vmul.f32 %v1454, %v1485
    %v1494 = vmul.f32 %v1455, %v1485
    %v1495 = vmul.f32 %v1456, %v1485
    %v1496 = vmul.f32 %v1457, %v1485
    %v1497 = vadd.f32 %v1468, %v1486
    %v1498 = vadd.f32 %v1469, %v1486
    %v1499 = vadd.f32 %v1470, %v1486
    %v1500 = vadd.f32 %v1471, %v1487
    %v1501 = vadd.f32 %v1472, %v1488
    %v1502 = vadd.f32 %v1473, %v1489
    %v1503 = vadd.f32 %v1474, %v1490
    %v1504 = vadd.f32 %v1475, %v1491
    %v1505 = vadd.f32 %v1476, %v1486
    %v1506 = vadd.f32 %v1477, %v1486
    %v1507 = vadd.f32 %v1478, %v1486
    %v1508 = vadd.f32 %v1479, %v1492
    %v1509 = vadd.f32 %v1480, %v1493
    %v1510 = vadd.f32 %v1481, %v1494
    %v1511 = vadd.f32 %v1482, %v1495
    %v1512 = vadd.f32 %v1483, %v1496
    %s1513 = scalar_lea.vmem [#allocation7], 136
    %v1514 = vld [vmem:[%s1513] sm:$0xff]
    %v1515 = vmul.f32 %v1445, %v1514
    %v1516 = vmul.f32 %v1446, %v1514
    %v1517 = vmul.f32 %v1447, %v1514
    %v1518 = vmul.f32 %v1448, %v1514
    %v1519 = vmul.f32 %v1449, %v1514
    %v1520 = vmul.f32 %v1450, %v1514
    %v1521 = vmul.f32 %v1451, %v1514
    %v1522 = vmul.f32 %v1452, %v1514
    %v1523 = vmul.f32 %v1453, %v1514
    %v1524 = vmul.f32 %v1454, %v1514
    %v1525 = vmul.f32 %v1455, %v1514
    %v1526 = vmul.f32 %v1456, %v1514
    %v1527 = vmul.f32 %v1457, %v1514
    %v1528 = vmul.f32 %v1458, %v1514
    %v1529 = vmul.f32 %v1459, %v1514
    %v1530 = vmul.f32 %v1460, %v1514
    %v1531 = vadd.f32 %v1497, %v1515
    %v1532 = vadd.f32 %v1498, %v1516
    %v1533 = vadd.f32 %v1499, %v1517
    %v1534 = vadd.f32 %v1500, %v1518
    %v1535 = vadd.f32 %v1501, %v1519
    %v1536 = vadd.f32 %v1502, %v1520
    %v1537 = vadd.f32 %v1503, %v1521
    %v1538 = vadd.f32 %v1504, %v1522
    %v1539 = vadd.f32 %v1505, %v1523
    %v1540 = vadd.f32 %v1506, %v1524
    %v1541 = vadd.f32 %v1507, %v1525
    %v1542 = vadd.f32 %v1508, %v1526
    %v1543 = vadd.f32 %v1509, %v1527
    %v1544 = vadd.f32 %v1510, %v1528
    %v1545 = vadd.f32 %v1511, %v1529
    %v1546 = vadd.f32 %v1512, %v1530
    %s1547 = scalar_lea.vmem [#allocation7], 144
    %v1548 = vld [vmem:[%s1547] sm:$0xff]
    %v1549 = vmul.f32 %v1448, %v1548
    %v1550 = vmul.f32 %v1449, %v1548
    %v1551 = vmul.f32 %v1450, %v1548
    %v1552 = vmul.f32 %v1451, %v1548
    %v1553 = vmul.f32 %v1452, %v1548
    %v1554 = vmul.f32 %v1548, 0.0
    %v1555 = vmul.f32 %v1456, %v1548
    %v1556 = vmul.f32 %v1457, %v1548
    %v1557 = vmul.f32 %v1458, %v1548
    %v1558 = vmul.f32 %v1459, %v1548
    %v1559 = vmul.f32 %v1460, %v1548
    %v1560 = vadd.f32 %v1531, %v1549
    %v1561 = vadd.f32 %v1532, %v1550
    %v1562 = vadd.f32 %v1533, %v1551
    %v1563 = vadd.f32 %v1534, %v1552
    %v1564 = vadd.f32 %v1535, %v1553
    %v1565 = vadd.f32 %v1536, %v1554
    %v1566 = vadd.f32 %v1537, %v1554
    %v1567 = vadd.f32 %v1538, %v1554
    %v1568 = vadd.f32 %v1539, %v1555
    %v1569 = vadd.f32 %v1540, %v1556
    %v1570 = vadd.f32 %v1541, %v1557
    %v1571 = vadd.f32 %v1542, %v1558
    %v1572 = vadd.f32 %v1543, %v1559
    %v1573 = vadd.f32 %v1544, %v1554
    %v1574 = vadd.f32 %v1545, %v1554
    %v1575 = vadd.f32 %v1546, %v1554
    %s1576 = scalar_lea.vmem [#allocation7], 152
    %v1577 = vld [vmem:[%s1576] sm:$0xff]
    %v1578 = vmul.f32 %v1451, %v1577
    %v1579 = vmul.f32 %v1452, %v1577
    %v1580 = vmul.f32 %v1577, 0.0
    %v1581 = vmul.f32 %v1459, %v1577
    %v1582 = vmul.f32 %v1460, %v1577
    %v1583 = vadd.f32 %v1560, %v1578
    %v1584 = vadd.f32 %v1561, %v1579
    %v1585 = vadd.f32 %v1562, %v1580
    %v1586 = vadd.f32 %v1563, %v1580
    %v1587 = vadd.f32 %v1564, %v1580
    %v1588 = vadd.f32 %v1565, %v1580
    %v1589 = vadd.f32 %v1566, %v1580
    %v1590 = vadd.f32 %v1567, %v1580
    %v1591 = vadd.f32 %v1568, %v1581
    %v1592 = vadd.f32 %v1569, %v1582
    %v1593 = vadd.f32 %v1570, %v1580
    %v1594 = vadd.f32 %v1571, %v1580
    %v1595 = vadd.f32 %v1572, %v1580
    %v1596 = vadd.f32 %v1573, %v1580
    %v1597 = vadd.f32 %v1574, %v1580
    %v1598 = vadd.f32 %v1575, %v1580
    %v1599 = vrot.slane %v937, 6
    %v1600 = vrot.slane %v938, 6
    %v1601 = vrot.slane %v939, 6
    %v1602 = vrot.slane %v940, 6
    %v1603 = vrot.slane %v941, 6
    %v1604 = vrot.slane %v942, 6
    %v1605 = vrot.slane %v943, 6
    %v1606 = vrot.slane %v944, 6
    %v1607 = vrot.slane %v945, 6
    %v1608 = vrot.slane %v946, 6
    %v1609 = vrot.slane %v947, 6
    %v1610 = vrot.slane %v948, 6
    %v1611 = vrot.slane %v949, 6
    %v1612 = vrot.slane %v950, 6
    %v1613 = vrot.slane %v951, 6
    %v1614 = vrot.slane %v952, 6
    %v1615 = vadd.s32 %v954, 6
    %vm1616 = vcmp.ge.s32.totalorder %v1615, 0
    %vm1617 = vcmp.lt.s32.totalorder %v1615, 8
    %vm1618 = vmand %vm1616, %vm1617
    %v1619 = vsel %vm1618, 1, 0
    %vm1620 = vcmp.eq.s32.totalorder %v1619, 1
    %v1621 = vsel %vm1620, %v1599, 0.0
    %v1622 = vsel %vm1620, %v1600, 0.0
    %v1623 = vsel %vm1620, %v1601, 0.0
    %v1624 = vsel %vm1620, %v1602, 0.0
    %v1625 = vsel %vm1620, %v1603, 0.0
    %v1626 = vsel %vm1620, %v1604, 0.0
    %v1627 = vsel %vm1620, %v1605, 0.0
    %v1628 = vsel %vm1620, %v1606, 0.0
    %v1629 = vsel %vm1620, %v1607, 0.0
    %v1630 = vsel %vm1620, %v1608, 0.0
    %v1631 = vsel %vm1620, %v1609, 0.0
    %v1632 = vsel %vm1620, %v1610, 0.0
    %v1633 = vsel %vm1620, %v1611, 0.0
    %v1634 = vsel %vm1620, %v1612, 0.0
    %v1635 = vsel %vm1620, %v1613, 0.0
    %v1636 = vsel %vm1620, %v1614, 0.0
    %s1637 = scalar_lea.vmem [#allocation7], 160
    %v1638 = vld [vmem:[%s1637] sm:$0xff]
    %v1639 = vmul.f32 %v1638, 0.0
    %v1640 = vmul.f32 %v1621, %v1638
    %v1641 = vmul.f32 %v1622, %v1638
    %v1642 = vmul.f32 %v1629, %v1638
    %v1643 = vmul.f32 %v1630, %v1638
    %v1644 = vadd.f32 %v1583, %v1639
    %v1645 = vadd.f32 %v1584, %v1639
    %v1646 = vadd.f32 %v1585, %v1639
    %v1647 = vadd.f32 %v1586, %v1639
    %v1648 = vadd.f32 %v1587, %v1639
    %v1649 = vadd.f32 %v1588, %v1639
    %v1650 = vadd.f32 %v1589, %v1640
    %v1651 = vadd.f32 %v1590, %v1641
    %v1652 = vadd.f32 %v1591, %v1639
    %v1653 = vadd.f32 %v1592, %v1639
    %v1654 = vadd.f32 %v1593, %v1639
    %v1655 = vadd.f32 %v1594, %v1639
    %v1656 = vadd.f32 %v1595, %v1639
    %v1657 = vadd.f32 %v1596, %v1639
    %v1658 = vadd.f32 %v1597, %v1642
    %v1659 = vadd.f32 %v1598, %v1643
    %s1660 = scalar_lea.vmem [#allocation7], 168
    %v1661 = vld [vmem:[%s1660] sm:$0xff]
    %v1662 = vmul.f32 %v1661, 0.0
    %v1663 = vmul.f32 %v1621, %v1661
    %v1664 = vmul.f32 %v1622, %v1661
    %v1665 = vmul.f32 %v1623, %v1661
    %v1666 = vmul.f32 %v1624, %v1661
    %v1667 = vmul.f32 %v1625, %v1661
    %v1668 = vmul.f32 %v1629, %v1661
    %v1669 = vmul.f32 %v1630, %v1661
    %v1670 = vmul.f32 %v1631, %v1661
    %v1671 = vmul.f32 %v1632, %v1661
    %v1672 = vmul.f32 %v1633, %v1661
    %v1673 = vadd.f32 %v1644, %v1662
    %v1674 = vadd.f32 %v1645, %v1662
    %v1675 = vadd.f32 %v1646, %v1662
    %v1676 = vadd.f32 %v1647, %v1663
    %v1677 = vadd.f32 %v1648, %v1664
    %v1678 = vadd.f32 %v1649, %v1665
    %v1679 = vadd.f32 %v1650, %v1666
    %v1680 = vadd.f32 %v1651, %v1667
    %v1681 = vadd.f32 %v1652, %v1662
    %v1682 = vadd.f32 %v1653, %v1662
    %v1683 = vadd.f32 %v1654, %v1662
    %v1684 = vadd.f32 %v1655, %v1668
    %v1685 = vadd.f32 %v1656, %v1669
    %v1686 = vadd.f32 %v1657, %v1670
    %v1687 = vadd.f32 %v1658, %v1671
    %v1688 = vadd.f32 %v1659, %v1672
    %s1689 = scalar_lea.vmem [#allocation7], 176
    %v1690 = vld [vmem:[%s1689] sm:$0xff]
    %v1691 = vmul.f32 %v1621, %v1690
    %v1692 = vmul.f32 %v1622, %v1690
    %v1693 = vmul.f32 %v1623, %v1690
    %v1694 = vmul.f32 %v1624, %v1690
    %v1695 = vmul.f32 %v1625, %v1690
    %v1696 = vmul.f32 %v1626, %v1690
    %v1697 = vmul.f32 %v1627, %v1690
    %v1698 = vmul.f32 %v1628, %v1690
    %v1699 = vmul.f32 %v1629, %v1690
    %v1700 = vmul.f32 %v1630, %v1690
    %v1701 = vmul.f32 %v1631, %v1690
    %v1702 = vmul.f32 %v1632, %v1690
    %v1703 = vmul.f32 %v1633, %v1690
    %v1704 = vmul.f32 %v1634, %v1690
    %v1705 = vmul.f32 %v1635, %v1690
    %v1706 = vmul.f32 %v1636, %v1690
    %v1707 = vadd.f32 %v1673, %v1691
    %v1708 = vadd.f32 %v1674, %v1692
    %v1709 = vadd.f32 %v1675, %v1693
    %v1710 = vadd.f32 %v1676, %v1694
    %v1711 = vadd.f32 %v1677, %v1695
    %v1712 = vadd.f32 %v1678, %v1696
    %v1713 = vadd.f32 %v1679, %v1697
    %v1714 = vadd.f32 %v1680, %v1698
    %v1715 = vadd.f32 %v1681, %v1699
    %v1716 = vadd.f32 %v1682, %v1700
    %v1717 = vadd.f32 %v1683, %v1701
    %v1718 = vadd.f32 %v1684, %v1702
    %v1719 = vadd.f32 %v1685, %v1703
    %v1720 = vadd.f32 %v1686, %v1704
    %v1721 = vadd.f32 %v1687, %v1705
    %v1722 = vadd.f32 %v1688, %v1706
    %s1723 = scalar_lea.vmem [#allocation7], 184
    %v1724 = vld [vmem:[%s1723] sm:$0xff]
    %v1725 = vmul.f32 %v1624, %v1724
    %v1726 = vmul.f32 %v1625, %v1724
    %v1727 = vmul.f32 %v1626, %v1724
    %v1728 = vmul.f32 %v1627, %v1724
    %v1729 = vmul.f32 %v1628, %v1724
    %v1730 = vmul.f32 %v1724, 0.0
    %v1731 = vmul.f32 %v1632, %v1724
    %v1732 = vmul.f32 %v1633, %v1724
    %v1733 = vmul.f32 %v1634, %v1724
    %v1734 = vmul.f32 %v1635, %v1724
    %v1735 = vmul.f32 %v1636, %v1724
    %v1736 = vadd.f32 %v1707, %v1725
    %v1737 = vadd.f32 %v1708, %v1726
    %v1738 = vadd.f32 %v1709, %v1727
    %v1739 = vadd.f32 %v1710, %v1728
    %v1740 = vadd.f32 %v1711, %v1729
    %v1741 = vadd.f32 %v1712, %v1730
    %v1742 = vadd.f32 %v1713, %v1730
    %v1743 = vadd.f32 %v1714, %v1730
    %v1744 = vadd.f32 %v1715, %v1731
    %v1745 = vadd.f32 %v1716, %v1732
    %v1746 = vadd.f32 %v1717, %v1733
    %v1747 = vadd.f32 %v1718, %v1734
    %v1748 = vadd.f32 %v1719, %v1735
    %v1749 = vadd.f32 %v1720, %v1730
    %v1750 = vadd.f32 %v1721, %v1730
    %v1751 = vadd.f32 %v1722, %v1730
    %s1752 = scalar_lea.vmem [#allocation7], 192
    %v1753 = vld [vmem:[%s1752] sm:$0xff]
    %v1754 = vmul.f32 %v1627, %v1753
    %v1755 = vmul.f32 %v1628, %v1753
    %v1756 = vmul.f32 %v1753, 0.0
    %v1757 = vmul.f32 %v1635, %v1753
    %v1758 = vmul.f32 %v1636, %v1753
    %v1759 = vadd.f32 %v1736, %v1754
    %v1760 = vadd.f32 %v1737, %v1755
    %v1761 = vadd.f32 %v1738, %v1756
    %v1762 = vadd.f32 %v1739, %v1756
    %v1763 = vadd.f32 %v1740, %v1756
    %v1764 = vadd.f32 %v1741, %v1756
    %v1765 = vadd.f32 %v1742, %v1756
    %v1766 = vadd.f32 %v1743, %v1756
    %v1767 = vadd.f32 %v1744, %v1757
    %v1768 = vadd.f32 %v1745, %v1758
    %v1769 = vadd.f32 %v1746, %v1756
    %v1770 = vadd.f32 %v1747, %v1756
    %v1771 = vadd.f32 %v1748, %v1756
    %v1772 = vadd.f32 %v1749, %v1756
    %v1773 = vadd.f32 %v1750, %v1756
    %v1774 = vadd.f32 %v1751, %v1756
    %v1775 = vpack.c.bf16 %v1760, %v1759
    %v1776 = vpack.c.bf16 %v1762, %v1761
    %v1777 = vpack.c.bf16 %v1764, %v1763
    %v1778 = vpack.c.bf16 %v1766, %v1765
    %v1779 = vpack.c.bf16 %v1768, %v1767
    %v1780 = vpack.c.bf16 %v1770, %v1769
    %v1781 = vpack.c.bf16 %v1772, %v1771
    %v1782 = vpack.c.bf16 %v1774, %v1773
    %v1783 = vld [vmem:[#allocation8] sm:$0xf]
    %v1784 = vld [vmem:[#allocation8 + $0x4] sm:$0xf]
    %v1785 = vld [vmem:[#allocation8 + $0x8] sm:$0xf]
    %v1786 = vld [vmem:[#allocation8 + $0xc] sm:$0xf]
    %v1787 = vld [vmem:[#allocation8 + $0x10] sm:$0xf]
    %v1788 = vld [vmem:[#allocation8 + $0x14] sm:$0xf]
    %v1789 = vld [vmem:[#allocation8 + $0x18] sm:$0xf]
    %v1790 = vld [vmem:[#allocation8 + $0x1c] sm:$0xf]
    %v1791 = vld [vmem:[#allocation8 + $0x20] sm:$0xf]
    %v1792 = vld [vmem:[#allocation8 + $0x24] sm:$0xf]
    %v1793 = vld [vmem:[#allocation8 + $0x28] sm:$0xf]
    %v1794 = vld [vmem:[#allocation8 + $0x2c] sm:$0xf]
    %v1795 = vld [vmem:[#allocation8 + $0x30] sm:$0xf]
    %v1796 = vld [vmem:[#allocation8 + $0x34] sm:$0xf]
    %v1797 = vld [vmem:[#allocation8 + $0x38] sm:$0xf]
    %v1798 = vld [vmem:[#allocation8 + $0x3c] sm:$0xf]
    %v1799 = vld [vmem:[%s5] sm:$0x1]
    %v1801 = vperm.slane %v1799, 0
    %v1819 = vunpack.c.l.b16 %v1783
    %v1820 = vunpack.c.l.b16 %v1784
    %v1821 = vunpack.c.l.b16 %v1785
    %v1822 = vunpack.c.l.b16 %v1786
    %v1823 = vunpack.c.l.b16 %v1787
    %v1824 = vunpack.c.l.b16 %v1788
    %v1825 = vunpack.c.l.b16 %v1789
    %v1826 = vunpack.c.l.b16 %v1790
    %v1827 = vunpack.c.l.b16 %v1791
    %v1828 = vunpack.c.l.b16 %v1792
    %v1829 = vunpack.c.l.b16 %v1793
    %v1830 = vunpack.c.l.b16 %v1794
    %v1831 = vunpack.c.l.b16 %v1795
    %v1832 = vunpack.c.l.b16 %v1796
    %v1833 = vunpack.c.l.b16 %v1797
    %v1834 = vunpack.c.l.b16 %v1798
    %v1835 = vpack.c.b16 %v1820, %v1819
    %v1836 = vpack.c.b16 %v1822, %v1821
    %v1837 = vpack.c.b16 %v1824, %v1823
    %v1838 = vpack.c.b16 %v1826, %v1825
    %v1839 = vpack.c.b16 %v1828, %v1827
    %v1840 = vpack.c.b16 %v1830, %v1829
    %v1841 = vpack.c.b16 %v1832, %v1831
    %v1842 = vpack.c.b16 %v1834, %v1833
    %1851 = vmatpush.bf16.msra.mxu0 %v1842
    %1852 = vmatpush.bf16.msra.mxu0 %v1841
    %1853 = vmatpush.bf16.msra.mxu0 %v1840
    %1854 = vmatpush.bf16.msra.mxu0 %v1839
    %1855 = vmatpush.bf16.msra.mxu0 %v1838
    %1856 = vmatpush.bf16.msra.mxu0 %v1837
    %1857 = vmatpush.bf16.msra.mxu0 %v1836
    %1858 = vmatpush.bf16.msra.mxu0 %v1835
    %1859 = vmatmul.bf16.gmra.mxu0 %v1775
    %v1860 = vpop.f32.mrf.mxu0
    %v1861 = vadd.f32 %v1801, %v1860
    %v1862 = vpop.f32.mrf.mxu0
    %v1863 = vadd.f32 %v1801, %v1862
    %1864 = vmatmul.bf16.gmra.mxu0 %v1776
    %v1865 = vpop.f32.mrf.mxu0
    %v1866 = vadd.f32 %v1801, %v1865
    %v1867 = vpop.f32.mrf.mxu0
    %v1868 = vadd.f32 %v1801, %v1867
    %1869 = vmatmul.bf16.gmra.mxu0 %v1777
    %v1870 = vpop.f32.mrf.mxu0
    %v1871 = vadd.f32 %v1801, %v1870
    %v1872 = vpop.f32.mrf.mxu0
    %v1873 = vadd.f32 %v1801, %v1872
    %1874 = vmatmul.bf16.gmra.mxu0 %v1778
    %v1875 = vpop.f32.mrf.mxu0
    %v1876 = vadd.f32 %v1801, %v1875
    %v1877 = vpop.f32.mrf.mxu0
    %v1878 = vadd.f32 %v1801, %v1877
    %1879 = vmatmul.bf16.gmra.mxu0 %v1779
    %v1880 = vpop.f32.mrf.mxu0
    %v1881 = vadd.f32 %v1801, %v1880
    %v1882 = vpop.f32.mrf.mxu0
    %v1883 = vadd.f32 %v1801, %v1882
    %1884 = vmatmul.bf16.gmra.mxu0 %v1780
    %v1885 = vpop.f32.mrf.mxu0
    %v1886 = vadd.f32 %v1801, %v1885
    %v1887 = vpop.f32.mrf.mxu0
    %v1888 = vadd.f32 %v1801, %v1887
    %1889 = vmatmul.bf16.gmra.mxu0 %v1781
    %v1890 = vpop.f32.mrf.mxu0
    %v1891 = vadd.f32 %v1801, %v1890
    %v1892 = vpop.f32.mrf.mxu0
    %v1893 = vadd.f32 %v1801, %v1892
    %1894 = vmatmul.bf16.gmra.mxu0 %v1782
    %v1895 = vpop.f32.mrf.mxu0
    %v1896 = vadd.f32 %v1801, %v1895
    %v1897 = vpop.f32.mrf.mxu0
    %v1898 = vadd.f32 %v1801, %v1897
    %1899 = vdwg.mxu0
    %v1900 = vmul.f32 %v937, %v1861
    %v1901 = vmul.f32 %v938, %v1863
    %v1902 = vmul.f32 %v939, %v1866
    %v1903 = vmul.f32 %v940, %v1868
    %v1904 = vmul.f32 %v941, %v1871
    %v1905 = vmul.f32 %v942, %v1873
    %v1906 = vmul.f32 %v943, %v1876
    %v1907 = vmul.f32 %v944, %v1878
    %v1908 = vmul.f32 %v945, %v1881
    %v1909 = vmul.f32 %v946, %v1883
    %v1910 = vmul.f32 %v947, %v1886
    %v1911 = vmul.f32 %v948, %v1888
    %v1912 = vmul.f32 %v949, %v1891
    %v1913 = vmul.f32 %v950, %v1893
    %v1914 = vmul.f32 %v951, %v1896
    %v1915 = vmul.f32 %v952, %v1898
    %v1916 = vpack.c.bf16 %v1901, %v1900
    %v1917 = vpack.c.bf16 %v1903, %v1902
    %v1918 = vpack.c.bf16 %v1905, %v1904
    %v1919 = vpack.c.bf16 %v1907, %v1906
    %v1920 = vpack.c.bf16 %v1909, %v1908
    %v1921 = vpack.c.bf16 %v1911, %v1910
    %v1922 = vpack.c.bf16 %v1913, %v1912
    %v1923 = vpack.c.bf16 %v1915, %v1914
    %v1924 = vld [vmem:[#allocation10] sm:$0xf]
    %v1925 = vld [vmem:[#allocation10 + $0x4] sm:$0xf]
    %v1926 = vld [vmem:[#allocation10 + $0x8] sm:$0xf]
    %v1927 = vld [vmem:[#allocation10 + $0xc] sm:$0xf]
    %v1928 = vld [vmem:[#allocation10 + $0x10] sm:$0xf]
    %v1929 = vld [vmem:[#allocation10 + $0x14] sm:$0xf]
    %v1930 = vld [vmem:[#allocation10 + $0x18] sm:$0xf]
    %v1931 = vld [vmem:[#allocation10 + $0x1c] sm:$0xf]
    %v1932 = vld [vmem:[#allocation10 + $0x20] sm:$0xf]
    %v1933 = vld [vmem:[#allocation10 + $0x24] sm:$0xf]
    %v1934 = vld [vmem:[#allocation10 + $0x28] sm:$0xf]
    %v1935 = vld [vmem:[#allocation10 + $0x2c] sm:$0xf]
    %v1936 = vld [vmem:[#allocation10 + $0x30] sm:$0xf]
    %v1937 = vld [vmem:[#allocation10 + $0x34] sm:$0xf]
    %v1938 = vld [vmem:[#allocation10 + $0x38] sm:$0xf]
    %v1939 = vld [vmem:[#allocation10 + $0x3c] sm:$0xf]
    %v1940 = vld [vmem:[%s7] sm:$0x1]
    %v1942 = vperm.slane %v1940, 0
    %v1960 = vunpack.c.l.b16 %v1924
    %v1961 = vunpack.c.l.b16 %v1925
    %v1962 = vunpack.c.l.b16 %v1926
    %v1963 = vunpack.c.l.b16 %v1927
    %v1964 = vunpack.c.l.b16 %v1928
    %v1965 = vunpack.c.l.b16 %v1929
    %v1966 = vunpack.c.l.b16 %v1930
    %v1967 = vunpack.c.l.b16 %v1931
    %v1968 = vunpack.c.l.b16 %v1932
    %v1969 = vunpack.c.l.b16 %v1933
    %v1970 = vunpack.c.l.b16 %v1934
    %v1971 = vunpack.c.l.b16 %v1935
    %v1972 = vunpack.c.l.b16 %v1936
    %v1973 = vunpack.c.l.b16 %v1937
    %v1974 = vunpack.c.l.b16 %v1938
    %v1975 = vunpack.c.l.b16 %v1939
    %v1976 = vpack.c.b16 %v1961, %v1960
    %v1977 = vpack.c.b16 %v1963, %v1962
    %v1978 = vpack.c.b16 %v1965, %v1964
    %v1979 = vpack.c.b16 %v1967, %v1966
    %v1980 = vpack.c.b16 %v1969, %v1968
    %v1981 = vpack.c.b16 %v1971, %v1970
    %v1982 = vpack.c.b16 %v1973, %v1972
    %v1983 = vpack.c.b16 %v1975, %v1974
    %1992 = vmatpush.bf16.msra.mxu0 %v1983
    %1993 = vmatpush.bf16.msra.mxu0 %v1982
    %1994 = vmatpush.bf16.msra.mxu0 %v1981
    %1995 = vmatpush.bf16.msra.mxu0 %v1980
    %1996 = vmatpush.bf16.msra.mxu0 %v1979
    %1997 = vmatpush.bf16.msra.mxu0 %v1978
    %1998 = vmatpush.bf16.msra.mxu0 %v1977
    %1999 = vmatpush.bf16.msra.mxu0 %v1976
    %2000 = vmatmul.bf16.gmra.mxu0 %v1916
    %v2001 = vpop.f32.mrf.mxu0
    %v2002 = vadd.f32 %v1942, %v2001
    %v2003 = vpop.f32.mrf.mxu0
    %v2004 = vadd.f32 %v1942, %v2003
    %2005 = vmatmul.bf16.gmra.mxu0 %v1917
    %v2006 = vpop.f32.mrf.mxu0
    %v2007 = vadd.f32 %v1942, %v2006
    %v2008 = vpop.f32.mrf.mxu0
    %v2009 = vadd.f32 %v1942, %v2008
    %2010 = vmatmul.bf16.gmra.mxu0 %v1918
    %v2011 = vpop.f32.mrf.mxu0
    %v2012 = vadd.f32 %v1942, %v2011
    %v2013 = vpop.f32.mrf.mxu0
    %v2014 = vadd.f32 %v1942, %v2013
    %2015 = vmatmul.bf16.gmra.mxu0 %v1919
    %v2016 = vpop.f32.mrf.mxu0
    %v2017 = vadd.f32 %v1942, %v2016
    %v2018 = vpop.f32.mrf.mxu0
    %v2019 = vadd.f32 %v1942, %v2018
    %2020 = vmatmul.bf16.gmra.mxu0 %v1920
    %v2021 = vpop.f32.mrf.mxu0
    %v2022 = vadd.f32 %v1942, %v2021
    %v2023 = vpop.f32.mrf.mxu0
    %v2024 = vadd.f32 %v1942, %v2023
    %2025 = vmatmul.bf16.gmra.mxu0 %v1921
    %v2026 = vpop.f32.mrf.mxu0
    %v2027 = vadd.f32 %v1942, %v2026
    %v2028 = vpop.f32.mrf.mxu0
    %v2029 = vadd.f32 %v1942, %v2028
    %2030 = vmatmul.bf16.gmra.mxu0 %v1922
    %v2031 = vpop.f32.mrf.mxu0
    %v2032 = vadd.f32 %v1942, %v2031
    %v2033 = vpop.f32.mrf.mxu0
    %v2034 = vadd.f32 %v1942, %v2033
    %2035 = vmatmul.bf16.gmra.mxu0 %v1923
    %v2036 = vpop.f32.mrf.mxu0
    %v2037 = vadd.f32 %v1942, %v2036
    %v2038 = vpop.f32.mrf.mxu0
    %v2039 = vadd.f32 %v1942, %v2038
    %2040 = vdwg.mxu0
    %v2041 = vadd.f32 %v2002, %v108
    %v2042 = vadd.f32 %v2004, %v109
    %v2043 = vadd.f32 %v2007, %v110
    %v2044 = vadd.f32 %v2009, %v111
    %v2045 = vadd.f32 %v2012, %v112
    %v2046 = vadd.f32 %v2014, %v113
    %v2047 = vadd.f32 %v2017, %v114
    %v2048 = vadd.f32 %v2019, %v115
    %v2049 = vadd.f32 %v2022, %v116
    %v2050 = vadd.f32 %v2024, %v117
    %v2051 = vadd.f32 %v2027, %v118
    %v2052 = vadd.f32 %v2029, %v119
    %v2053 = vadd.f32 %v2032, %v120
    %v2054 = vadd.f32 %v2034, %v121
    %v2055 = vadd.f32 %v2037, %v122
    %v2056 = vadd.f32 %v2039, %v123
    %2057 = vst [vmem:[#allocation11] sm:$0xff] %v2041
    %2058 = vst [vmem:[#allocation11 + $0x8] sm:$0xff] %v2042
    %2059 = vst [vmem:[#allocation11 + $0x10] sm:$0xff] %v2043
    %2060 = vst [vmem:[#allocation11 + $0x18] sm:$0xff] %v2044
    %2061 = vst [vmem:[#allocation11 + $0x20] sm:$0xff] %v2045
    %2062 = vst [vmem:[#allocation11 + $0x28] sm:$0xff] %v2046
    %2063 = vst [vmem:[#allocation11 + $0x30] sm:$0xff] %v2047
    %2064 = vst [vmem:[#allocation11 + $0x38] sm:$0xff] %v2048
    %2065 = vst [vmem:[#allocation11 + $0x40] sm:$0xff] %v2049
    %2066 = vst [vmem:[#allocation11 + $0x48] sm:$0xff] %v2050
    %2067 = vst [vmem:[#allocation11 + $0x50] sm:$0xff] %v2051
    %2068 = vst [vmem:[#allocation11 + $0x58] sm:$0xff] %v2052
    %2069 = vst [vmem:[#allocation11 + $0x60] sm:$0xff] %v2053
    %2070 = vst [vmem:[#allocation11 + $0x68] sm:$0xff] %v2054
    %2071 = vst [vmem:[#allocation11 + $0x70] sm:$0xff] %v2055
    %2072 = vst [vmem:[#allocation11 + $0x78] sm:$0xff] %v2056
    // Predicated region
    $region54: #{tpu_custom_call.1} parent=1 // pred_check
      _
    $region55: #{tpu_custom_call.1} parent=1 // pred_check_branch
      %2074 = sbr.rel (0) target = $region57
    $region56: #{tpu_custom_call.1} parent=1 // pred_region
      %2076 = vsyncadd [#allocation4], 0
      %s2077 = sshll.u32 [#allocation11], 4
      %s2078 = int_to_ptr.vmem [resolvable:$true] %s2077
      %s2079 = sshll.u32 %s8, 4
      %s2080 = int_to_ptr.hbm [resolvable:$true] %s2079
      %2085 = dma.vmem_to_hbm [thread:$0]  %s2078, 2048, %s2080, [#allocation4], 128, 128, 8
    $region57: #{tpu_custom_call.1} parent=1 // pred_fallthru
      _
    // Predicated region
    $region58: #{tpu_custom_call.1} parent=1 // pred_check
      _
    $region59: #{tpu_custom_call.1} parent=1 // pred_check_branch
      %2087 = sbr.rel (0) target = $region61
    $region60: #{tpu_custom_call.1} parent=1 // pred_region
      %2089 = dma.done [#allocation4], 2048
    $region61: #{tpu_custom_call.1} parent=1 // pred_fallthru
      _
    %2090 = vsyncpa [#allocation3], 1
    %2091 = vsyncpa [#allocation6], 1
    %2092 = vsyncpa [#allocation9], 1
    %2093 = vsyncpa [#allocation4], 1

</llo_original>
